<compile_context>
chip_gen: v7x
topology: tpu7x:2x2x1
jax: 0.10.0
libtpu: 0.0.40
codegen_flags: <defaults>
</compile_context>

<pallas_src>
import numpy as np
import jax
import jax.numpy as jnp
from jax import lax
from jax.experimental import pallas as pl
from jax.experimental.pallas import tpu as pltpu

BS_SIZE = 256
IM_CHANNELS = 1
N_FILTERS = 16


# ----------------------------- Pallas kernel ------------------------------- #
def _decoder_kernel(x_ref, wfc_ref, bfc_ref, w1_ref, b1_ref, w2_ref, b2_ref,
                    out_ref, hcat_ref, op2_ref):
    TB = x_ref.shape[0]                     # batch tile (multiple of 8)
    x = x_ref[...]                          # [TB, 256]

    # ---- fc + ReLU --------------------------------------------------------
    # Spatial row i of the 8x8x16 map for the whole tile:
    #   h_i = relu(x @ Wfc_i + b_i)   [TB, 128]   (128 = 8 widths * 16 channels)
    # written straight into the K-concatenated deconv1 operand:
    #   hcat[m*TB + b, 0:128]   = h row m      (m = 0..6)
    #   hcat[m*TB + b, 128:256] = h row m+1
    for i in range(8):
        h_i = jnp.dot(x, wfc_ref[i], preferred_element_type=jnp.float32)
        h_i = jnp.maximum(h_i + bfc_ref[i:i + 1, :], 0.0)
        if i < 7:
            hcat_ref[i * TB:(i + 1) * TB, 0:128] = h_i
        if i > 0:
            hcat_ref[(i - 1) * TB:i * TB, 128:256] = h_i

    # ---- deconv1 + ReLU: one K=256 matmul per output-row phase ------------
    # output row 2m+r = h[m] (kernel row r+2) + h[m+1] (kernel row r); width
    # direction + channel mixing folded into w1_ref[r] (N padded 224 -> 256).
    b1 = b1_ref[...]
    p_even = jnp.maximum(
        jnp.dot(hcat_ref[...], w1_ref[0], preferred_element_type=jnp.float32) + b1, 0.0)
    p_odd = jnp.maximum(
        jnp.dot(hcat_ref[...], w1_ref[1], preferred_element_type=jnp.float32) + b1, 0.0)

    # ---- stage the fused deconv2 operand -----------------------------------
    # op2 row q*TB+b, column blocks of 256: [ P1[q-1] | P0[q] | P1[q] | P0[q+1] ]
    # (P0 = even deconv1 rows, P1 = odd rows; boundary rows are zero).
    zeros_blk = jnp.zeros((TB, 256), jnp.float32)
    op2_ref[:, 256:512] = p_even                        # P0[q]
    op2_ref[:, 512:768] = p_odd                         # P1[q]
    op2_ref[0:TB, 0:256] = zeros_blk                    # P1[-1] = 0
    op2_ref[TB:7 * TB, 0:256] = p_odd[0:6 * TB, :]      # P1[q-1], q >= 1
    op2_ref[0:6 * TB, 768:1024] = p_even[TB:7 * TB, :]  # P0[q+1], q <= 5
    op2_ref[6 * TB:7 * TB, 768:1024] = zeros_blk        # P0[7]  = 0

    # ---- deconv2 + Sigmoid: ONE fused matmul for all 4 output-row phases ---
    # out column p*28+ow = image row 4q+p, width ow   (cols 112..127 are pad).
    acc = jnp.dot(op2_ref[...], w2_ref[...], preferred_element_type=jnp.float32)
    acc = acc + b2_ref[0]
    out_ref[...] = pl.reciprocal(1.0 + jnp.exp(-acc), approx=True)


# ----------------------- one-time parameter prep --------------------------- #
def prepare_decoder_params(params):
    """Fold all layout work (col reorder, kernel flips, phase packing, padding)
    into one-time host-side weight preprocessing."""
    C = N_FILTERS
    fc_w = np.asarray(params["fc_w"], np.float32)      # [1024, 256]
    fc_b = np.asarray(params["fc_b"], np.float32)      # [1024]
    w1 = np.asarray(params["deconv1_w"], np.float32)   # [16, 16, 4, 4] (cin,cout,kh,kw)
    b1 = np.asarray(params["deconv1_b"], np.float32)   # [16]
    w2 = np.asarray(params["deconv2_w"], np.float32)   # [16, 1, 4, 4]
    b2 = np.asarray(params["deconv2_b"], np.float32)   # [1]

    # fc: [K=256, 1024] with columns reordered (row i, width j, channel c),
    # split per spatial row -> [8, 256, 128].
    wfc = fc_w.T.reshape(BS_SIZE, C, 8, 8).transpose(0, 2, 3, 1)    # [k, i, j, c]
    wfc8 = np.ascontiguousarray(wfc.reshape(BS_SIZE, 8, 8 * C).transpose(1, 0, 2))
    bfc8 = np.ascontiguousarray(
        fc_b.reshape(C, 8, 8).transpose(1, 2, 0).reshape(8, 8 * C))  # [8, 128]

    # deconv1: K = [h row m (128) ; h row m+1 (128)], N = 14 widths x 16 ch,
    # zero-padded 224 -> 256.  Output row 2m+r uses kernel rows (r+2, r).
    w1k = np.zeros((2, 256, 256), np.float32)
    for r in range(2):
        for iw in range(8):
            for kw in range(4):
                ow = 2 * iw + kw - 2
                if 0 <= ow < 14:
                    w1k[r, iw * C:(iw + 1) * C, ow * C:(ow + 1) * C] = w1[:, :, r + 2, kw]
                    w1k[r, 128 + iw * C:128 + (iw + 1) * C, ow * C:(ow + 1) * C] = w1[:, :, r, kw]
    b1pad = np.zeros((1, 256), np.float32)
    b1pad[0, :14 * C] = np.tile(b1, 14)

    # deconv2: one fused [1024, 128] matrix.  K blocks of 256 (a1 row sources):
    #   0 = P1[q-1], 1 = P0[q], 2 = P1[q], 3 = P0[q+1]
    # N = 4 phases * 28 widths (output row 4q+p), zero-padded to 128 lanes.
    w2k = np.zeros((4, 256, 128), np.float32)

    def _acc(kblock, kh, p):
        for iw in range(14):
            for kw in range(4):
                ow = 2 * iw + kw - 1
                if 0 <= ow < 28:
                    w2k[kblock, iw * C:(iw + 1) * C, p * 28 + ow] += w2[:, 0, kh, kw]

    _acc(0, 3, 0); _acc(1, 1, 0)      # p=0: rows 2q-1 (kh=3), 2q   (kh=1)
    _acc(1, 2, 1); _acc(2, 0, 1)      # p=1: rows 2q   (kh=2), 2q+1 (kh=0)
    _acc(1, 3, 2); _acc(2, 1, 2)      # p=2: rows 2q   (kh=3), 2q+1 (kh=1)
    _acc(2, 2, 3); _acc(3, 0, 3)      # p=3: rows 2q+1 (kh=2), 2q+2 (kh=0)
    w2k = np.ascontiguousarray(w2k.reshape(4 * 256, 128))

    return {
        "wfc": jnp.asarray(wfc8), "bfc": jnp.asarray(bfc8),
        "w1": jnp.asarray(w1k), "b1": jnp.asarray(b1pad),
        "w2": jnp.asarray(w2k), "b2": jnp.asarray(b2.reshape(1)),
    }


def _vmem_limit_bytes(TB, prep):
    w_bytes = sum(int(np.prod(v.shape)) * 4 for v in prep.values())
    io_bytes = (TB * BS_SIZE + 7 * TB * 128) * 4 * 2            # double-buffered x/out tiles
    scratch = (7 * TB * 256 + 7 * TB * 1024) * 4                # hcat + op2
    est = 2 * w_bytes + io_bytes + scratch
    # >= default everywhere, capped well under v7x's 64 MiB physical VMEM.
    return int(min(48 * 1024 * 1024, max(16 * 1024 * 1024, 2 * est)))


# ------------------------------- forward ----------------------------------- #
def decoder_forward(x, prep, block_b=8):
    B = x.shape[0]
    TB = int(block_b)
    assert TB % 8 == 0, "batch tile must be a multiple of 8 sublanes"
    G = -(-B // TB)
    Bp = G * TB
    xp = x if Bp == B else jnp.concatenate(
        [x, jnp.zeros((Bp - B, BS_SIZE), x.dtype)], axis=0)

    out = pl.pallas_call(
        _decoder_kernel,
        out_shape=jax.ShapeDtypeStruct((G, 7 * TB, 128), jnp.float32),
        grid=(G,),
        in_specs=[
            pl.BlockSpec((TB, BS_SIZE), lambda g: (g, 0)),          # x tile
            pl.BlockSpec((8, BS_SIZE, 128), lambda g: (0, 0, 0)),   # fc weights (per spatial row)
            pl.BlockSpec((8, 128), lambda g: (0, 0)),               # fc bias
            pl.BlockSpec((2, 256, 256), lambda g: (0, 0, 0)),       # deconv1 phase matrices
            pl.BlockSpec((1, 256), lambda g: (0, 0)),               # deconv1 bias row (padded)
            pl.BlockSpec((1024, 128), lambda g: (0, 0)),            # deconv2 fused matrix
            pl.BlockSpec(memory_space=pltpu.MemorySpace.SMEM),      # deconv2 scalar bias
        ],
        out_specs=pl.BlockSpec((None, 7 * TB, 128), lambda g: (g, 0, 0)),
        scratch_shapes=[
            pltpu.VMEM((7 * TB, 256), jnp.float32),     # K-concat fc activation (hcat)
            pltpu.VMEM((7 * TB, 1024), jnp.float32),    # fused deconv2 operand  (op2)
        ],
        compiler_params=pltpu.CompilerParams(
            dimension_semantics=("parallel",),
            vmem_limit_bytes=_vmem_limit_bytes(TB, prep)),
    )(xp, prep["wfc"], prep["bfc"], prep["w1"], prep["b1"], prep["w2"], prep["b2"])

    # Un-permute outside the kernel (free XLA reshape/transpose):
    #   out[g, q*TB + b, p*28 + ow] = image[g*TB + b, 4q + p, ow]
    img = out[:, :, :4 * 28].reshape(G, 7, TB, 4, 28)
    img = jnp.transpose(img, (0, 2, 1, 3, 4)).reshape(Bp, 28, 28)
    return img[:B].reshape(B, IM_CHANNELS, 28, 28)


# ------------------- pure-JAX reference (PyTorch semantics) ---------------- #
def _conv_transpose_ref(y, w_t, b, stride, pad):
    k = w_t.shape[2]
    w_conv = jnp.transpose(w_t, (1, 0, 2, 3))[:, :, ::-1, ::-1]
    out = lax.conv_general_dilated(
        y, w_conv, window_strides=(1, 1),
        padding=[(k - 1 - pad, k - 1 - pad)] * 2,
        lhs_dilation=(stride, stride),
        dimension_numbers=("NCHW", "OIHW", "NCHW"),
        precision=lax.Precision.HIGHEST)
    return out + b.reshape(1, -1, 1, 1)


def decoder_reference(x, params):
    h = jnp.maximum(
        jnp.dot(x, params["fc_w"].T, precision=lax.Precision.HIGHEST)
        + params["fc_b"], 0.0)
    h = h.reshape(x.shape[0], N_FILTERS, 8, 8)
    a1 = jnp.maximum(
        _conv_transpose_ref(h, params["deconv1_w"], params["deconv1_b"], 2, 2), 0.0)
    out = _conv_transpose_ref(a1, params["deconv2_w"], params["deconv2_b"], 2, 1)
    return jax.nn.sigmoid(out)


if __name__ == "__main__":
    key = jax.random.PRNGKey(0)
    ks = jax.random.split(key, 7)
    B = 12                                  # not a tile multiple -> exercises padding; grid=(2,)
    x = jax.random.normal(ks[0], (B, BS_SIZE), jnp.float32)

    params = {
        "fc_w": jax.random.normal(ks[1], (N_FILTERS * 8 * 8, BS_SIZE), jnp.float32) * 0.05,
        "fc_b": jax.random.normal(ks[2], (N_FILTERS * 8 * 8,), jnp.float32) * 0.10,
        "deconv1_w": jax.random.normal(ks[3], (N_FILTERS, N_FILTERS, 4, 4), jnp.float32) * 0.10,
        "deconv1_b": jax.random.normal(ks[4], (N_FILTERS,), jnp.float32) * 0.10,
        "deconv2_w": jax.random.normal(ks[5], (N_FILTERS, IM_CHANNELS, 4, 4), jnp.float32) * 0.10,
        "deconv2_b": jax.random.normal(ks[6], (IM_CHANNELS,), jnp.float32) * 0.10,
    }

    prep = prepare_decoder_params(params)             # one-time, outside the hot path
    fwd = jax.jit(decoder_forward, static_argnames=("block_b",))

    out = jax.block_until_ready(fwd(x, prep, block_b=8))
    ref = decoder_reference(x, params)

    assert out.shape == (B, IM_CHANNELS, 28, 28)
    # Tolerance covers the approximate-reciprocal sigmoid (~2^-12 relative);
    # with an exact divide this matches at 5e-4.
    np.testing.assert_allclose(np.asarray(out), np.asarray(ref), atol=1.5e-3, rtol=1.5e-3)
    print("KERNEL_OK")
</pallas_src>

<mosaic_0001>
module attributes {stable_mosaic.version = 11 : i64} {
  func.func @_decoder_kernel(%arg0: i32, %arg1: memref<8x256xf32, #tpu.memory_space<vmem>>, %arg2: memref<8x256x128xf32, #tpu.memory_space<vmem>>, %arg3: memref<8x128xf32, #tpu.memory_space<vmem>>, %arg4: memref<2x256x256xf32, #tpu.memory_space<vmem>>, %arg5: memref<1x256xf32, #tpu.memory_space<vmem>>, %arg6: memref<1024x128xf32, #tpu.memory_space<vmem>>, %arg7: memref<1xf32, #tpu.memory_space<smem>>, %arg8: memref<1x56x128xf32, #tpu.memory_space<vmem>>, %arg9: memref<56x256xf32, #tpu.memory_space<vmem>>, %arg10: memref<56x1024xf32, #tpu.memory_space<vmem>>) attributes {dimension_semantics = [#tpu.dimension_semantics<parallel>], iteration_bounds = array<i64: 2>, scalar_prefetch = 0 : i64, scratch_operands = 2 : i64, tpu.core_type = #tpu.core_type<tc>, window_params = [{transform_indices = @transform_0, window_bounds = array<i64: 8, 256>}, {pipeline_mode = #tpu.pipeline_mode<synchronous>, transform_indices = @transform_1, window_bounds = array<i64: 8, 256, 128>}, {pipeline_mode = #tpu.pipeline_mode<synchronous>, transform_indices = @transform_2, window_bounds = array<i64: 8, 128>}, {pipeline_mode = #tpu.pipeline_mode<synchronous>, transform_indices = @transform_3, window_bounds = array<i64: 2, 256, 256>}, {pipeline_mode = #tpu.pipeline_mode<synchronous>, transform_indices = @transform_4, window_bounds = array<i64: 1, 256>}, {pipeline_mode = #tpu.pipeline_mode<synchronous>, transform_indices = @transform_5, window_bounds = array<i64: 1024, 128>}, {transform_indices = @transform_6, window_bounds = array<i64: 1>}, {transform_indices = @transform_7, window_bounds = array<i64: 1, 56, 128>}]} {
    %c0 = arith.constant 0 : index
    %c0_0 = arith.constant 0 : index
    %0 = vector.load %arg1[%c0, %c0_0] : memref<8x256xf32, #tpu.memory_space<vmem>>, vector<8x256xf32>
    %c0_1 = arith.constant 0 : index
    %c0_2 = arith.constant 0 : index
    %c0_3 = arith.constant 0 : index
    %1 = vector.load %arg2[%c0_1, %c0_2, %c0_3] : memref<8x256x128xf32, #tpu.memory_space<vmem>>, vector<1x256x128xf32>
    %2 = vector.shape_cast %1 : vector<1x256x128xf32> to vector<256x128xf32>
    %cst = arith.constant dense<0.000000e+00> : vector<8x128xf32>
    %3 = tpu.matmul %0, %2, %cst {dimension_numbers = #tpu.dot_dimension_numbers<[1], [0], [0], [1], [0, 0, 1, 1], [], []>} : vector<8x256xf32>, vector<256x128xf32>, vector<8x128xf32> -> vector<8x128xf32>
    %c0_4 = arith.constant 0 : index
    %c0_5 = arith.constant 0 : index
    %4 = vector.load %arg3[%c0_4, %c0_5] : memref<8x128xf32, #tpu.memory_space<vmem>>, vector<1x128xf32>
    %5 = vector.broadcast %4 : vector<1x128xf32> to vector<8x128xf32>
    %6 = arith.addf %3, %5 : vector<8x128xf32>
    %cst_6 = arith.constant 0.000000e+00 : f32
    %7 = vector.broadcast %cst_6 : f32 to vector<8x128xf32>
    %8 = arith.maximumf %6, %7 : vector<8x128xf32>
    %c0_7 = arith.constant 0 : index
    %c0_8 = arith.constant 0 : index
    %9 = vector.load %arg9[%c0_7, %c0_8] : memref<56x256xf32, #tpu.memory_space<vmem>>, vector<8x128xf32>
    tpu.vector_store %arg9[%c0_7, %c0_8], %8 {strides = array<i32>} : memref<56x256xf32, #tpu.memory_space<vmem>>, vector<8x128xf32>,
    %c1 = arith.constant 1 : index
    %c0_9 = arith.constant 0 : index
    %c0_10 = arith.constant 0 : index
    %10 = vector.load %arg2[%c1, %c0_9, %c0_10] : memref<8x256x128xf32, #tpu.memory_space<vmem>>, vector<1x256x128xf32>
    %11 = vector.shape_cast %10 : vector<1x256x128xf32> to vector<256x128xf32>
    %cst_11 = arith.constant dense<0.000000e+00> : vector<8x128xf32>
    %12 = tpu.matmul %0, %11, %cst_11 {dimension_numbers = #tpu.dot_dimension_numbers<[1], [0], [0], [1], [0, 0, 1, 1], [], []>} : vector<8x256xf32>, vector<256x128xf32>, vector<8x128xf32> -> vector<8x128xf32>
    %c1_12 = arith.constant 1 : index
    %c0_13 = arith.constant 0 : index
    %13 = vector.load %arg3[%c1_12, %c0_13] : memref<8x128xf32, #tpu.memory_space<vmem>>, vector<1x128xf32>
    %14 = vector.broadcast %13 : vector<1x128xf32> to vector<8x128xf32>
    %15 = arith.addf %12, %14 : vector<8x128xf32>
    %cst_14 = arith.constant 0.000000e+00 : f32
    %16 = vector.broadcast %cst_14 : f32 to vector<8x128xf32>
    %17 = arith.maximumf %15, %16 : vector<8x128xf32>
    %c8 = arith.constant 8 : index
    %c0_15 = arith.constant 0 : index
    %18 = vector.load %arg9[%c8, %c0_15] : memref<56x256xf32, #tpu.memory_space<vmem>>, vector<8x128xf32>
    tpu.vector_store %arg9[%c8, %c0_15], %17 {strides = array<i32>} : memref<56x256xf32, #tpu.memory_space<vmem>>, vector<8x128xf32>,
    %c0_16 = arith.constant 0 : index
    %c128 = arith.constant 128 : index
    %19 = vector.load %arg9[%c0_16, %c128] : memref<56x256xf32, #tpu.memory_space<vmem>>, vector<8x128xf32>
    tpu.vector_store %arg9[%c0_16, %c128], %17 {strides = array<i32>} : memref<56x256xf32, #tpu.memory_space<vmem>>, vector<8x128xf32>,
    %c2 = arith.constant 2 : index
    %c0_17 = arith.constant 0 : index
    %c0_18 = arith.constant 0 : index
    %20 = vector.load %arg2[%c2, %c0_17, %c0_18] : memref<8x256x128xf32, #tpu.memory_space<vmem>>, vector<1x256x128xf32>
    %21 = vector.shape_cast %20 : vector<1x256x128xf32> to vector<256x128xf32>
    %cst_19 = arith.constant dense<0.000000e+00> : vector<8x128xf32>
    %22 = tpu.matmul %0, %21, %cst_19 {dimension_numbers = #tpu.dot_dimension_numbers<[1], [0], [0], [1], [0, 0, 1, 1], [], []>} : vector<8x256xf32>, vector<256x128xf32>, vector<8x128xf32> -> vector<8x128xf32>
    %c2_20 = arith.constant 2 : index
    %c0_21 = arith.constant 0 : index
    %23 = vector.load %arg3[%c2_20, %c0_21] : memref<8x128xf32, #tpu.memory_space<vmem>>, vector<1x128xf32>
    %24 = vector.broadcast %23 : vector<1x128xf32> to vector<8x128xf32>
    %25 = arith.addf %22, %24 : vector<8x128xf32>
    %cst_22 = arith.constant 0.000000e+00 : f32
    %26 = vector.broadcast %cst_22 : f32 to vector<8x128xf32>
    %27 = arith.maximumf %25, %26 : vector<8x128xf32>
    %c16 = arith.constant 16 : index
    %c0_23 = arith.constant 0 : index
    %28 = vector.load %arg9[%c16, %c0_23] : memref<56x256xf32, #tpu.memory_space<vmem>>, vector<8x128xf32>
    tpu.vector_store %arg9[%c16, %c0_23], %27 {strides = array<i32>} : memref<56x256xf32, #tpu.memory_space<vmem>>, vector<8x128xf32>,
    %c8_24 = arith.constant 8 : index
    %c128_25 = arith.constant 128 : index
    %29 = vector.load %arg9[%c8_24, %c128_25] : memref<56x256xf32, #tpu.memory_space<vmem>>, vector<8x128xf32>
    tpu.vector_store %arg9[%c8_24, %c128_25], %27 {strides = array<i32>} : memref<56x256xf32, #tpu.memory_space<vmem>>, vector<8x128xf32>,
    %c3 = arith.constant 3 : index
    %c0_26 = arith.constant 0 : index
    %c0_27 = arith.constant 0 : index
    %30 = vector.load %arg2[%c3, %c0_26, %c0_27] : memref<8x256x128xf32, #tpu.memory_space<vmem>>, vector<1x256x128xf32>
    %31 = vector.shape_cast %30 : vector<1x256x128xf32> to vector<256x128xf32>
    %cst_28 = arith.constant dense<0.000000e+00> : vector<8x128xf32>
    %32 = tpu.matmul %0, %31, %cst_28 {dimension_numbers = #tpu.dot_dimension_numbers<[1], [0], [0], [1], [0, 0, 1, 1], [], []>} : vector<8x256xf32>, vector<256x128xf32>, vector<8x128xf32> -> vector<8x128xf32>
    %c3_29 = arith.constant 3 : index
    %c0_30 = arith.constant 0 : index
    %33 = vector.load %arg3[%c3_29, %c0_30] : memref<8x128xf32, #tpu.memory_space<vmem>>, vector<1x128xf32>
    %34 = vector.broadcast %33 : vector<1x128xf32> to vector<8x128xf32>
    %35 = arith.addf %32, %34 : vector<8x128xf32>
    %cst_31 = arith.constant 0.000000e+00 : f32
    %36 = vector.broadcast %cst_31 : f32 to vector<8x128xf32>
    %37 = arith.maximumf %35, %36 : vector<8x128xf32>
    %c24 = arith.constant 24 : index
    %c0_32 = arith.constant 0 : index
    %38 = vector.load %arg9[%c24, %c0_32] : memref<56x256xf32, #tpu.memory_space<vmem>>, vector<8x128xf32>
    tpu.vector_store %arg9[%c24, %c0_32], %37 {strides = array<i32>} : memref<56x256xf32, #tpu.memory_space<vmem>>, vector<8x128xf32>,
    %c16_33 = arith.constant 16 : index
    %c128_34 = arith.constant 128 : index
    %39 = vector.load %arg9[%c16_33, %c128_34] : memref<56x256xf32, #tpu.memory_space<vmem>>, vector<8x128xf32>
    tpu.vector_store %arg9[%c16_33, %c128_34], %37 {strides = array<i32>} : memref<56x256xf32, #tpu.memory_space<vmem>>, vector<8x128xf32>,
    %c4 = arith.constant 4 : index
    %c0_35 = arith.constant 0 : index
    %c0_36 = arith.constant 0 : index
    %40 = vector.load %arg2[%c4, %c0_35, %c0_36] : memref<8x256x128xf32, #tpu.memory_space<vmem>>, vector<1x256x128xf32>
    %41 = vector.shape_cast %40 : vector<1x256x128xf32> to vector<256x128xf32>
    %cst_37 = arith.constant dense<0.000000e+00> : vector<8x128xf32>
    %42 = tpu.matmul %0, %41, %cst_37 {dimension_numbers = #tpu.dot_dimension_numbers<[1], [0], [0], [1], [0, 0, 1, 1], [], []>} : vector<8x256xf32>, vector<256x128xf32>, vector<8x128xf32> -> vector<8x128xf32>
    %c4_38 = arith.constant 4 : index
    %c0_39 = arith.constant 0 : index
    %43 = vector.load %arg3[%c4_38, %c0_39] : memref<8x128xf32, #tpu.memory_space<vmem>>, vector<1x128xf32>
    %44 = vector.broadcast %43 : vector<1x128xf32> to vector<8x128xf32>
    %45 = arith.addf %42, %44 : vector<8x128xf32>
    %cst_40 = arith.constant 0.000000e+00 : f32
    %46 = vector.broadcast %cst_40 : f32 to vector<8x128xf32>
    %47 = arith.maximumf %45, %46 : vector<8x128xf32>
    %c32 = arith.constant 32 : index
    %c0_41 = arith.constant 0 : index
    %48 = vector.load %arg9[%c32, %c0_41] : memref<56x256xf32, #tpu.memory_space<vmem>>, vector<8x128xf32>
    tpu.vector_store %arg9[%c32, %c0_41], %47 {strides = array<i32>} : memref<56x256xf32, #tpu.memory_space<vmem>>, vector<8x128xf32>,
    %c24_42 = arith.constant 24 : index
    %c128_43 = arith.constant 128 : index
    %49 = vector.load %arg9[%c24_42, %c128_43] : memref<56x256xf32, #tpu.memory_space<vmem>>, vector<8x128xf32>
    tpu.vector_store %arg9[%c24_42, %c128_43], %47 {strides = array<i32>} : memref<56x256xf32, #tpu.memory_space<vmem>>, vector<8x128xf32>,
    %c5 = arith.constant 5 : index
    %c0_44 = arith.constant 0 : index
    %c0_45 = arith.constant 0 : index
    %50 = vector.load %arg2[%c5, %c0_44, %c0_45] : memref<8x256x128xf32, #tpu.memory_space<vmem>>, vector<1x256x128xf32>
    %51 = vector.shape_cast %50 : vector<1x256x128xf32> to vector<256x128xf32>
    %cst_46 = arith.constant dense<0.000000e+00> : vector<8x128xf32>
    %52 = tpu.matmul %0, %51, %cst_46 {dimension_numbers = #tpu.dot_dimension_numbers<[1], [0], [0], [1], [0, 0, 1, 1], [], []>} : vector<8x256xf32>, vector<256x128xf32>, vector<8x128xf32> -> vector<8x128xf32>
    %c5_47 = arith.constant 5 : index
    %c0_48 = arith.constant 0 : index
    %53 = vector.load %arg3[%c5_47, %c0_48] : memref<8x128xf32, #tpu.memory_space<vmem>>, vector<1x128xf32>
    %54 = vector.broadcast %53 : vector<1x128xf32> to vector<8x128xf32>
    %55 = arith.addf %52, %54 : vector<8x128xf32>
    %cst_49 = arith.constant 0.000000e+00 : f32
    %56 = vector.broadcast %cst_49 : f32 to vector<8x128xf32>
    %57 = arith.maximumf %55, %56 : vector<8x128xf32>
    %c40 = arith.constant 40 : index
    %c0_50 = arith.constant 0 : index
    %58 = vector.load %arg9[%c40, %c0_50] : memref<56x256xf32, #tpu.memory_space<vmem>>, vector<8x128xf32>
    tpu.vector_store %arg9[%c40, %c0_50], %57 {strides = array<i32>} : memref<56x256xf32, #tpu.memory_space<vmem>>, vector<8x128xf32>,
    %c32_51 = arith.constant 32 : index
    %c128_52 = arith.constant 128 : index
    %59 = vector.load %arg9[%c32_51, %c128_52] : memref<56x256xf32, #tpu.memory_space<vmem>>, vector<8x128xf32>
    tpu.vector_store %arg9[%c32_51, %c128_52], %57 {strides = array<i32>} : memref<56x256xf32, #tpu.memory_space<vmem>>, vector<8x128xf32>,
    %c6 = arith.constant 6 : index
    %c0_53 = arith.constant 0 : index
    %c0_54 = arith.constant 0 : index
    %60 = vector.load %arg2[%c6, %c0_53, %c0_54] : memref<8x256x128xf32, #tpu.memory_space<vmem>>, vector<1x256x128xf32>
    %61 = vector.shape_cast %60 : vector<1x256x128xf32> to vector<256x128xf32>
    %cst_55 = arith.constant dense<0.000000e+00> : vector<8x128xf32>
    %62 = tpu.matmul %0, %61, %cst_55 {dimension_numbers = #tpu.dot_dimension_numbers<[1], [0], [0], [1], [0, 0, 1, 1], [], []>} : vector<8x256xf32>, vector<256x128xf32>, vector<8x128xf32> -> vector<8x128xf32>
    %c6_56 = arith.constant 6 : index
    %c0_57 = arith.constant 0 : index
    %63 = vector.load %arg3[%c6_56, %c0_57] : memref<8x128xf32, #tpu.memory_space<vmem>>, vector<1x128xf32>
    %64 = vector.broadcast %63 : vector<1x128xf32> to vector<8x128xf32>
    %65 = arith.addf %62, %64 : vector<8x128xf32>
    %cst_58 = arith.constant 0.000000e+00 : f32
    %66 = vector.broadcast %cst_58 : f32 to vector<8x128xf32>
    %67 = arith.maximumf %65, %66 : vector<8x128xf32>
    %c48 = arith.constant 48 : index
    %c0_59 = arith.constant 0 : index
    %68 = vector.load %arg9[%c48, %c0_59] : memref<56x256xf32, #tpu.memory_space<vmem>>, vector<8x128xf32>
    tpu.vector_store %arg9[%c48, %c0_59], %67 {strides = array<i32>} : memref<56x256xf32, #tpu.memory_space<vmem>>, vector<8x128xf32>,
    %c40_60 = arith.constant 40 : index
    %c128_61 = arith.constant 128 : index
    %69 = vector.load %arg9[%c40_60, %c128_61] : memref<56x256xf32, #tpu.memory_space<vmem>>, vector<8x128xf32>
    tpu.vector_store %arg9[%c40_60, %c128_61], %67 {strides = array<i32>} : memref<56x256xf32, #tpu.memory_space<vmem>>, vector<8x128xf32>,
    %c7 = arith.constant 7 : index
    %c0_62 = arith.constant 0 : index
    %c0_63 = arith.constant 0 : index
    %70 = vector.load %arg2[%c7, %c0_62, %c0_63] : memref<8x256x128xf32, #tpu.memory_space<vmem>>, vector<1x256x128xf32>
    %71 = vector.shape_cast %70 : vector<1x256x128xf32> to vector<256x128xf32>
    %cst_64 = arith.constant dense<0.000000e+00> : vector<8x128xf32>
    %72 = tpu.matmul %0, %71, %cst_64 {dimension_numbers = #tpu.dot_dimension_numbers<[1], [0], [0], [1], [0, 0, 1, 1], [], []>} : vector<8x256xf32>, vector<256x128xf32>, vector<8x128xf32> -> vector<8x128xf32>
    %c7_65 = arith.constant 7 : index
    %c0_66 = arith.constant 0 : index
    %73 = vector.load %arg3[%c7_65, %c0_66] : memref<8x128xf32, #tpu.memory_space<vmem>>, vector<1x128xf32>
    %74 = vector.broadcast %73 : vector<1x128xf32> to vector<8x128xf32>
    %75 = arith.addf %72, %74 : vector<8x128xf32>
    %cst_67 = arith.constant 0.000000e+00 : f32
    %76 = vector.broadcast %cst_67 : f32 to vector<8x128xf32>
    %77 = arith.maximumf %75, %76 : vector<8x128xf32>
    %c48_68 = arith.constant 48 : index
    %c128_69 = arith.constant 128 : index
    %78 = vector.load %arg9[%c48_68, %c128_69] : memref<56x256xf32, #tpu.memory_space<vmem>>, vector<8x128xf32>
    tpu.vector_store %arg9[%c48_68, %c128_69], %77 {strides = array<i32>} : memref<56x256xf32, #tpu.memory_space<vmem>>, vector<8x128xf32>,
    %c0_70 = arith.constant 0 : index
    %c0_71 = arith.constant 0 : index
    %79 = vector.load %arg5[%c0_70, %c0_71] : memref<1x256xf32, #tpu.memory_space<vmem>>, vector<1x256xf32>
    %c0_72 = arith.constant 0 : index
    %c0_73 = arith.constant 0 : index
    %80 = vector.load %arg9[%c0_72, %c0_73] : memref<56x256xf32, #tpu.memory_space<vmem>>, vector<56x256xf32>
    %c0_74 = arith.constant 0 : index
    %c0_75 = arith.constant 0 : index
    %c0_76 = arith.constant 0 : index
    %81 = vector.load %arg4[%c0_74, %c0_75, %c0_76] : memref<2x256x256xf32, #tpu.memory_space<vmem>>, vector<1x256x256xf32>
    %82 = vector.shape_cast %81 : vector<1x256x256xf32> to vector<256x256xf32>
    %cst_77 = arith.constant dense<0.000000e+00> : vector<56x256xf32>
    %83 = tpu.matmul %80, %82, %cst_77 {dimension_numbers = #tpu.dot_dimension_numbers<[1], [0], [0], [1], [0, 0, 1, 1], [], []>} : vector<56x256xf32>, vector<256x256xf32>, vector<56x256xf32> -> vector<56x256xf32>
    %84 = vector.broadcast %79 : vector<1x256xf32> to vector<56x256xf32>
    %85 = arith.addf %83, %84 : vector<56x256xf32>
    %cst_78 = arith.constant 0.000000e+00 : f32
    %86 = vector.broadcast %cst_78 : f32 to vector<56x256xf32>
    %87 = arith.maximumf %85, %86 : vector<56x256xf32>
    %c0_79 = arith.constant 0 : index
    %c0_80 = arith.constant 0 : index
    %88 = vector.load %arg9[%c0_79, %c0_80] : memref<56x256xf32, #tpu.memory_space<vmem>>, vector<56x256xf32>
    %c1_81 = arith.constant 1 : index
    %c0_82 = arith.constant 0 : index
    %c0_83 = arith.constant 0 : index
    %89 = vector.load %arg4[%c1_81, %c0_82, %c0_83] : memref<2x256x256xf32, #tpu.memory_space<vmem>>, vector<1x256x256xf32>
    %90 = vector.shape_cast %89 : vector<1x256x256xf32> to vector<256x256xf32>
    %cst_84 = arith.constant dense<0.000000e+00> : vector<56x256xf32>
    %91 = tpu.matmul %88, %90, %cst_84 {dimension_numbers = #tpu.dot_dimension_numbers<[1], [0], [0], [1], [0, 0, 1, 1], [], []>} : vector<56x256xf32>, vector<256x256xf32>, vector<56x256xf32> -> vector<56x256xf32>
    %92 = vector.broadcast %79 : vector<1x256xf32> to vector<56x256xf32>
    %93 = arith.addf %91, %92 : vector<56x256xf32>
    %cst_85 = arith.constant 0.000000e+00 : f32
    %94 = vector.broadcast %cst_85 : f32 to vector<56x256xf32>
    %95 = arith.maximumf %93, %94 : vector<56x256xf32>
    %cst_86 = arith.constant 0.000000e+00 : f32
    %96 = vector.broadcast %cst_86 : f32 to vector<8x256xf32>
    %c0_87 = arith.constant 0 : index
    %c256 = arith.constant 256 : index
    %97 = vector.load %arg10[%c0_87, %c256] : memref<56x1024xf32, #tpu.memory_space<vmem>>, vector<56x256xf32>
    tpu.vector_store %arg10[%c0_87, %c256], %87 {strides = array<i32>} : memref<56x1024xf32, #tpu.memory_space<vmem>>, vector<56x256xf32>,
    %c0_88 = arith.constant 0 : index
    %c512 = arith.constant 512 : index
    %98 = vector.load %arg10[%c0_88, %c512] : memref<56x1024xf32, #tpu.memory_space<vmem>>, vector<56x256xf32>
    tpu.vector_store %arg10[%c0_88, %c512], %95 {strides = array<i32>} : memref<56x1024xf32, #tpu.memory_space<vmem>>, vector<56x256xf32>,
    %c0_89 = arith.constant 0 : index
    %c0_90 = arith.constant 0 : index
    %99 = vector.load %arg10[%c0_89, %c0_90] : memref<56x1024xf32, #tpu.memory_space<vmem>>, vector<8x256xf32>
    tpu.vector_store %arg10[%c0_89, %c0_90], %96 {strides = array<i32>} : memref<56x1024xf32, #tpu.memory_space<vmem>>, vector<8x256xf32>,
    %100 = vector.extract_strided_slice %95 {offsets = [0, 0], sizes = [48, 256], strides = [1, 1]} : vector<56x256xf32> to vector<48x256xf32>
    %c8_91 = arith.constant 8 : index
    %c0_92 = arith.constant 0 : index
    %101 = vector.load %arg10[%c8_91, %c0_92] : memref<56x1024xf32, #tpu.memory_space<vmem>>, vector<48x256xf32>
    tpu.vector_store %arg10[%c8_91, %c0_92], %100 {strides = array<i32>} : memref<56x1024xf32, #tpu.memory_space<vmem>>, vector<48x256xf32>,
    %102 = vector.extract_strided_slice %87 {offsets = [8, 0], sizes = [48, 256], strides = [1, 1]} : vector<56x256xf32> to vector<48x256xf32>
    %c0_93 = arith.constant 0 : index
    %c768 = arith.constant 768 : index
    %103 = vector.load %arg10[%c0_93, %c768] : memref<56x1024xf32, #tpu.memory_space<vmem>>, vector<48x256xf32>
    tpu.vector_store %arg10[%c0_93, %c768], %102 {strides = array<i32>} : memref<56x1024xf32, #tpu.memory_space<vmem>>, vector<48x256xf32>,
    %c48_94 = arith.constant 48 : index
    %c768_95 = arith.constant 768 : index
    %104 = vector.load %arg10[%c48_94, %c768_95] : memref<56x1024xf32, #tpu.memory_space<vmem>>, vector<8x256xf32>
    tpu.vector_store %arg10[%c48_94, %c768_95], %96 {strides = array<i32>} : memref<56x1024xf32, #tpu.memory_space<vmem>>, vector<8x256xf32>,
    %c0_96 = arith.constant 0 : index
    %c0_97 = arith.constant 0 : index
    %105 = vector.load %arg10[%c0_96, %c0_97] : memref<56x1024xf32, #tpu.memory_space<vmem>>, vector<56x1024xf32>
    %c0_98 = arith.constant 0 : index
    %c0_99 = arith.constant 0 : index
    %106 = vector.load %arg6[%c0_98, %c0_99] : memref<1024x128xf32, #tpu.memory_space<vmem>>, vector<1024x128xf32>
    %cst_100 = arith.constant dense<0.000000e+00> : vector<56x128xf32>
    %107 = tpu.matmul %105, %106, %cst_100 {dimension_numbers = #tpu.dot_dimension_numbers<[1], [0], [0], [1], [0, 0, 1, 1], [], []>} : vector<56x1024xf32>, vector<1024x128xf32>, vector<56x128xf32> -> vector<56x128xf32>
    %c0_101 = arith.constant 0 : index
    %108 = memref.load %arg7[%c0_101] : memref<1xf32, #tpu.memory_space<smem>>
    %109 = vector.broadcast %108 : f32 to vector<56x128xf32>
    %110 = arith.addf %107, %109 : vector<56x128xf32>
    %cst_102 = arith.constant 0.000000e+00 : f32
    %111 = vector.broadcast %cst_102 : f32 to vector<56x128xf32>
    %112 = arith.subf %111, %110 : vector<56x128xf32>
    %113 = math.exp %112 : vector<56x128xf32>
    %cst_103 = arith.constant 1.000000e+00 : f32
    %114 = vector.broadcast %cst_103 : f32 to vector<56x128xf32>
    %115 = arith.addf %114, %113 : vector<56x128xf32>
    %116 = tpu.reciprocal %115 {approx = true} : vector<56x128xf32> -> vector<56x128xf32>
    %c0_104 = arith.constant 0 : index
    %c0_105 = arith.constant 0 : index
    %c0_106 = arith.constant 0 : index
    %117 = vector.load %arg8[%c0_104, %c0_105, %c0_106] : memref<1x56x128xf32, #tpu.memory_space<vmem>>, vector<1x56x128xf32>
    %118 = vector.shape_cast %117 : vector<1x56x128xf32> to vector<56x128xf32>
    %119 = vector.shape_cast %116 : vector<56x128xf32> to vector<1x56x128xf32>
    tpu.vector_store %arg8[%c0_104, %c0_105, %c0_106], %119 {strides = array<i32>} : memref<1x56x128xf32, #tpu.memory_space<vmem>>, vector<1x56x128xf32>,
    return
  }
  func.func @transform_0(%arg0: i32) -> (i32, i32) {
    %c0_i32 = arith.constant 0 : i32
    %c0_i32_0 = arith.constant 0 : i32
    return %arg0, %c0_i32 : i32, i32
  }
  func.func @transform_1(%arg0: i32) -> (i32, i32, i32) {
    %c0_i32 = arith.constant 0 : i32
    %c0_i32_0 = arith.constant 0 : i32
    %c0_i32_1 = arith.constant 0 : i32
    %c0_i32_2 = arith.constant 0 : i32
    return %c0_i32, %c0_i32_0, %c0_i32_1 : i32, i32, i32
  }
  func.func @transform_2(%arg0: i32) -> (i32, i32) {
    %c0_i32 = arith.constant 0 : i32
    %c0_i32_0 = arith.constant 0 : i32
    %c0_i32_1 = arith.constant 0 : i32
    return %c0_i32, %c0_i32_0 : i32, i32
  }
  func.func @transform_3(%arg0: i32) -> (i32, i32, i32) {
    %c0_i32 = arith.constant 0 : i32
    %c0_i32_0 = arith.constant 0 : i32
    %c0_i32_1 = arith.constant 0 : i32
    %c0_i32_2 = arith.constant 0 : i32
    return %c0_i32, %c0_i32_0, %c0_i32_1 : i32, i32, i32
  }
  func.func @transform_4(%arg0: i32) -> (i32, i32) {
    %c0_i32 = arith.constant 0 : i32
    %c0_i32_0 = arith.constant 0 : i32
    %c0_i32_1 = arith.constant 0 : i32
    return %c0_i32, %c0_i32_0 : i32, i32
  }
  func.func @transform_5(%arg0: i32) -> (i32, i32) {
    %c0_i32 = arith.constant 0 : i32
    %c0_i32_0 = arith.constant 0 : i32
    %c0_i32_1 = arith.constant 0 : i32
    return %c0_i32, %c0_i32_0 : i32, i32
  }
  func.func @transform_6(%arg0: i32) -> i32 {
    %c0_i32 = arith.constant 0 : i32
    %c0_i32_0 = arith.constant 0 : i32
    return %c0_i32 : i32
  }
  func.func @transform_7(%arg0: i32) -> (i32, i32, i32) {
    %c0_i32 = arith.constant 0 : i32
    %c0_i32_0 = arith.constant 0 : i32
    %c0_i32_1 = arith.constant 0 : i32
    return %arg0, %c0_i32, %c0_i32_0 : i32, i32, i32
  }
}

</mosaic_0001>

<llo_original>
// kernel: decoder_forward.1
$region0: #{decoder_forward.1}
  #allocation0 [shape = 'u32[]', space=smem, size = 0x4, offset = 0x4, fixed_abs, tag = 'smem constant byte address 0x4 - core index']
  #allocation1 [shape = 'u32[144,128]{1,0:T(1,128)}', space=vmem, size = 0x12000, scoped, tag = 'internal scratch']
  #allocation2 [shape = 'f32[56,256]{1,0:T(8,128)}', space=vmem, size = 0xe000, scoped, tag = 'scratch operand']
  #allocation3 [shape = 'f32[56,1024]{1,0:T(8,128)}', space=vmem, size = 0x38000, scoped, tag = 'scratch operand']
  #allocation4 [shape = 'f32[1]{0:T(128)S(6)}', space=smem, size = 0x200, scoped, tag = 'scoped memory for decoder_forward.1']
  %s0 = inlined_call_operand.vmem [shape: f32[16,256], index: 0, kind: input, shape index: {}]
  %s1 = inlined_call_operand.hbm [shape: f32[8,256,128], index: 1, kind: input, shape index: {}]
  %s2 = inlined_call_operand.vmem [shape: f32[8,128], index: 2, kind: input, shape index: {}]
  %s3 = inlined_call_operand.hbm [shape: f32[2,256,256], index: 3, kind: input, shape index: {}]
  %s4 = inlined_call_operand.vmem [shape: f32[1,256], index: 4, kind: input, shape index: {}]
  %s5 = inlined_call_operand.hbm [shape: f32[1024,128], index: 5, kind: input, shape index: {}]
  %s6 = inlined_call_operand.<no memory space> [shape: f32[1], index: 6, kind: input, shape index: {}]
  %s7 = inlined_call_operand.vmem [shape: f32[2,56,128], index: 7, kind: output, shape index: {}]
  %s8 = sld [smem:[#allocation0]]
  $region73: #{decoder_forward.1} parent=0
    _
  %s10 = ssub.s32 1, %s8
  %s11 = scalar_select 0, %s10, %s8
  %12 = sst [smem:[#allocation4]] %s6
  $region1: #{decoder_forward.1} parent=0
    #allocation5 [shape = 'u8[1048576]{0}', space=vmem, size = 0x100000, scoped, tag = 'input window, operand 1, single buffered']
    #allocation6 [shape = 's32[2]{0}', space=sflag, size = 0x8, scoped, tag = 'scoped memory for decoder_forward.1']
    #allocation7 [shape = 'u8[524288]{0}', space=vmem, size = 0x80000, scoped, tag = 'input window, operand 3, single buffered']
    #allocation8 [shape = 's32[1]{0}', space=sflag, size = 0x4, scoped, tag = 'scoped memory for decoder_forward.1']
    #allocation9 [shape = 'u8[524288]{0}', space=vmem, size = 0x80000, scoped, tag = 'input window, operand 5, single buffered']
    %13 = vsyncpa [#allocation6], 0
    %14 = vsyncpa [#allocation8], 0
    loop: start=0, step=1, limit=4
    $region2: #{decoder_forward.1} parent=1 // loop_pre_header
      _
    $region3: #{decoder_forward.1} parent=1 // loop_header
      %s16 = sphi 0, %s20
      %p17 = scmp.ge.s32.totalorder %s16, 4
      %s26 = sphi 0, %s28
      %s29 = sphi 0, %s26
      %s30 = sphi 0, %s29
      %s46 = sphi 0, %s30
      %s50 = sphi 0, %s50
      %s52 = sphi 0, %s50
      %s53 = sphi 0, %s52
      %s67 = sphi 0, %s53
      %s71 = sphi 0, %s71
      %s73 = sphi 0, %s71
      %s74 = sphi 0, %s73
      %s88 = sphi 0, %s74
      %s92 = sphi 0, %s92
      %s94 = sphi 0, %s92
      %s95 = sphi 0, %s94
      %s109 = sphi 0, %s95
      %s113 = sphi 0, %s113
      %s115 = sphi 0, %s113
      %s116 = sphi 0, %s115
      %s130 = sphi 0, %s116
      %s134 = sphi 0, %s134
      %s136 = sphi 0, %s134
      %s137 = sphi 0, %s136
      %s151 = sphi 0, %s137
      %s155 = sphi 0, %s155
      %s157 = sphi 0, %s155
      %s158 = sphi 0, %s157
      %s172 = sphi 0, %s158
      %s178 = sphi 0, %s180
      %s181 = sphi 0, %s178
      %s182 = sphi 0, %s181
      %s198 = sphi 0, %s182
    $region4: #{decoder_forward.1} parent=1 // loop_header_branch
      %19 = sbr.rel (%p17) target = $region8
    $region5: #{decoder_forward.1} parent=1 // loop_body
      %s21 = ssub.s32 %s16, 1
      %s22 = ssub.s32 %s16, 2
      %s23 = sadd.s32 %s16, 1
      %s24 = ssub.s32 %s16, %s23
      %p25 = scmp.eq.s32.totalorder %s24, 0
      %s27 = sadd.s32 %s26, 1
      %s28 = scalar_select %p25, %s26, %s27
      %p31 = pneg %p25
      %p32 = scmp.eq.s32.totalorder %s16, 1
      %p33 = por %p31, %p32
      %p34 = scmp.ne.s32.totalorder %s26, %s29
      %p35 = scmp.eq.s32.totalorder %s16, 0
      %p36 = por %p34, %p35
      %p37 = scmp.ne.s32.totalorder %s26, %s29
      %p38 = scmp.eq.s32.totalorder %s21, 1
      %p39 = por %p37, %p38
      %p40 = scmp.ne.s32.totalorder %s29, %s30
      %p41 = scmp.eq.s32.totalorder %s21, 0
      %p42 = por %p40, %p41
      %p43 = scmp.ne.s32.totalorder %s29, %s30
      %p44 = scmp.eq.s32.totalorder %s22, 1
      %p45 = por %p43, %p44
      %p47 = scmp.ne.s32.totalorder %s30, %s46
      %p48 = scmp.eq.s32.totalorder %s22, 0
      %p49 = por %p47, %p48
      %s51 = sadd.s32 %s50, 1
      %p54 = scmp.eq.s32.totalorder %s16, 1
      %p55 = scmp.ne.s32.totalorder %s50, %s52
      %p56 = scmp.eq.s32.totalorder %s16, 0
      %p57 = por %p55, %p56
      %p58 = scmp.ne.s32.totalorder %s50, %s52
      %p59 = scmp.eq.s32.totalorder %s21, 1
      %p60 = por %p58, %p59
      %p61 = scmp.ne.s32.totalorder %s52, %s53
      %p62 = scmp.eq.s32.totalorder %s21, 0
      %p63 = por %p61, %p62
      %p64 = scmp.ne.s32.totalorder %s52, %s53
      %p65 = scmp.eq.s32.totalorder %s22, 1
      %p66 = por %p64, %p65
      %p68 = scmp.ne.s32.totalorder %s53, %s67
      %p69 = scmp.eq.s32.totalorder %s22, 0
      %p70 = por %p68, %p69
      %s72 = sadd.s32 %s71, 1
      %p75 = scmp.eq.s32.totalorder %s16, 1
      %p76 = scmp.ne.s32.totalorder %s71, %s73
      %p77 = scmp.eq.s32.totalorder %s16, 0
      %p78 = por %p76, %p77
      %p79 = scmp.ne.s32.totalorder %s71, %s73
      %p80 = scmp.eq.s32.totalorder %s21, 1
      %p81 = por %p79, %p80
      %p82 = scmp.ne.s32.totalorder %s73, %s74
      %p83 = scmp.eq.s32.totalorder %s21, 0
      %p84 = por %p82, %p83
      %p85 = scmp.ne.s32.totalorder %s73, %s74
      %p86 = scmp.eq.s32.totalorder %s22, 1
      %p87 = por %p85, %p86
      %p89 = scmp.ne.s32.totalorder %s74, %s88
      %p90 = scmp.eq.s32.totalorder %s22, 0
      %p91 = por %p89, %p90
      %s93 = sadd.s32 %s92, 1
      %p96 = scmp.eq.s32.totalorder %s16, 1
      %p97 = scmp.ne.s32.totalorder %s92, %s94
      %p98 = scmp.eq.s32.totalorder %s16, 0
      %p99 = por %p97, %p98
      %p100 = scmp.ne.s32.totalorder %s92, %s94
      %p101 = scmp.eq.s32.totalorder %s21, 1
      %p102 = por %p100, %p101
      %p103 = scmp.ne.s32.totalorder %s94, %s95
      %p104 = scmp.eq.s32.totalorder %s21, 0
      %p105 = por %p103, %p104
      %p106 = scmp.ne.s32.totalorder %s94, %s95
      %p107 = scmp.eq.s32.totalorder %s22, 1
      %p108 = por %p106, %p107
      %p110 = scmp.ne.s32.totalorder %s95, %s109
      %p111 = scmp.eq.s32.totalorder %s22, 0
      %p112 = por %p110, %p111
      %s114 = sadd.s32 %s113, 1
      %p117 = scmp.eq.s32.totalorder %s16, 1
      %p118 = scmp.ne.s32.totalorder %s113, %s115
      %p119 = scmp.eq.s32.totalorder %s16, 0
      %p120 = por %p118, %p119
      %p121 = scmp.ne.s32.totalorder %s113, %s115
      %p122 = scmp.eq.s32.totalorder %s21, 1
      %p123 = por %p121, %p122
      %p124 = scmp.ne.s32.totalorder %s115, %s116
      %p125 = scmp.eq.s32.totalorder %s21, 0
      %p126 = por %p124, %p125
      %p127 = scmp.ne.s32.totalorder %s115, %s116
      %p128 = scmp.eq.s32.totalorder %s22, 1
      %p129 = por %p127, %p128
      %p131 = scmp.ne.s32.totalorder %s116, %s130
      %p132 = scmp.eq.s32.totalorder %s22, 0
      %p133 = por %p131, %p132
      %s135 = sadd.s32 %s134, 1
      %p138 = scmp.eq.s32.totalorder %s16, 1
      %p139 = scmp.ne.s32.totalorder %s134, %s136
      %p140 = scmp.eq.s32.totalorder %s16, 0
      %p141 = por %p139, %p140
      %p142 = scmp.ne.s32.totalorder %s134, %s136
      %p143 = scmp.eq.s32.totalorder %s21, 1
      %p144 = por %p142, %p143
      %p145 = scmp.ne.s32.totalorder %s136, %s137
      %p146 = scmp.eq.s32.totalorder %s21, 0
      %p147 = por %p145, %p146
      %p148 = scmp.ne.s32.totalorder %s136, %s137
      %p149 = scmp.eq.s32.totalorder %s22, 1
      %p150 = por %p148, %p149
      %p152 = scmp.ne.s32.totalorder %s137, %s151
      %p153 = scmp.eq.s32.totalorder %s22, 0
      %p154 = por %p152, %p153
      %s156 = sadd.s32 %s155, 1
      %p159 = scmp.eq.s32.totalorder %s16, 1
      %p160 = scmp.ne.s32.totalorder %s155, %s157
      %p161 = scmp.eq.s32.totalorder %s16, 0
      %p162 = por %p160, %p161
      %p163 = scmp.ne.s32.totalorder %s155, %s157
      %p164 = scmp.eq.s32.totalorder %s21, 1
      %p165 = por %p163, %p164
      %p166 = scmp.ne.s32.totalorder %s157, %s158
      %p167 = scmp.eq.s32.totalorder %s21, 0
      %p168 = por %p166, %p167
      %p169 = scmp.ne.s32.totalorder %s157, %s158
      %p170 = scmp.eq.s32.totalorder %s22, 1
      %p171 = por %p169, %p170
      %p173 = scmp.ne.s32.totalorder %s158, %s172
      %p174 = scmp.eq.s32.totalorder %s22, 0
      %p175 = por %p173, %p174
      %s176 = ssub.s32 %s16, %s23
      %p177 = scmp.eq.s32.totalorder %s176, 0
      %s179 = sadd.s32 %s178, 1
      %s180 = scalar_select %p177, %s178, %s179
      %p183 = pneg %p177
      %p184 = scmp.eq.s32.totalorder %s16, 1
      %p185 = por %p183, %p184
      %p186 = scmp.ne.s32.totalorder %s178, %s181
      %p187 = scmp.eq.s32.totalorder %s16, 0
      %p188 = por %p186, %p187
      %p189 = scmp.ne.s32.totalorder %s178, %s181
      %p190 = scmp.eq.s32.totalorder %s21, 1
      %p191 = por %p189, %p190
      %p192 = scmp.ne.s32.totalorder %s181, %s182
      %p193 = scmp.eq.s32.totalorder %s21, 0
      %p194 = por %p192, %p193
      %p195 = scmp.ne.s32.totalorder %s181, %s182
      %p196 = scmp.eq.s32.totalorder %s22, 1
      %p197 = por %p195, %p196
      %p199 = scmp.ne.s32.totalorder %s182, %s198
      %p200 = scmp.eq.s32.totalorder %s22, 0
      %p201 = por %p199, %p200
      %p202 = scmp.le.s32.totalorder 1, %s16
      %p203 = scmp.lt.s32.totalorder %s16, 3
      %p204 = pnand %p202, %p203
      %p205 = pneg %p204
      // Predicated region
      $region9: #{decoder_forward.1} parent=5 // pred_check
        _
      $region10: #{decoder_forward.1} parent=5 // pred_check_branch
        %207 = sbr.rel (%p204) target = $region12
      $region11: #{decoder_forward.1} parent=5 // pred_region
        %s208 = ssub.s32 %s16, 1
        // Predicated region
        $region13: #{decoder_forward.1} parent=11 // pred_check
          %p209 = pneg %p63
        $region14: #{decoder_forward.1} parent=11 // pred_check_branch
          %211 = sbr.rel (%p209) target = $region16
        $region15: #{decoder_forward.1} parent=11 // pred_region
          %s213 = ssub.s32 32768, 32768
          %214 = vsyncadd [#allocation6], %s213
          %s215 = sshll.u32 [#allocation5], 4
          %s216 = int_to_ptr.vmem [resolvable:$true] %s215
          %221 = dma.hbm_to_vmem [thread:$0]  %s1, 32768, %s216, [#allocation6], 128, 128, 8
        $region16: #{decoder_forward.1} parent=11 // pred_fallthru
          _
        // Predicated region
        $region17: #{decoder_forward.1} parent=11 // pred_check
          %p222 = pneg %p84
        $region18: #{decoder_forward.1} parent=11 // pred_check_branch
          %224 = sbr.rel (%p222) target = $region20
        $region19: #{decoder_forward.1} parent=11 // pred_region
          _
        $region20: #{decoder_forward.1} parent=11 // pred_fallthru
          _
        // Predicated region
        $region21: #{decoder_forward.1} parent=11 // pred_check
          %p225 = pneg %p105
        $region22: #{decoder_forward.1} parent=11 // pred_check_branch
          %227 = sbr.rel (%p225) target = $region24
        $region23: #{decoder_forward.1} parent=11 // pred_region
          %s229 = ssub.s32 16384, 16384
          %230 = vsyncadd [#allocation8], %s229
          %s231 = sshll.u32 [#allocation7], 4
          %s232 = int_to_ptr.vmem [resolvable:$true] %s231
          %237 = dma.hbm_to_vmem [thread:$0]  %s3, 16384, %s232, [#allocation8], 256, 256, 16
        $region24: #{decoder_forward.1} parent=11 // pred_fallthru
          _
        // Predicated region
        $region25: #{decoder_forward.1} parent=11 // pred_check
          %p238 = pneg %p126
        $region26: #{decoder_forward.1} parent=11 // pred_check_branch
          %240 = sbr.rel (%p238) target = $region28
        $region27: #{decoder_forward.1} parent=11 // pred_region
          _
        $region28: #{decoder_forward.1} parent=11 // pred_fallthru
          _
        // Predicated region
        $region29: #{decoder_forward.1} parent=11 // pred_check
          %p241 = pneg %p147
        $region30: #{decoder_forward.1} parent=11 // pred_check_branch
          %243 = sbr.rel (%p241) target = $region32
        $region31: #{decoder_forward.1} parent=11 // pred_region
          %s245 = ssub.s32 16384, 16384
          %246 = vsyncadd [#allocation8], %s245
          %s247 = sshll.u32 [#allocation9], 4
          %s248 = int_to_ptr.vmem [resolvable:$true] %s247
          %253 = dma.hbm_to_vmem [thread:$0]  %s5, 16384, %s248, [#allocation8], 128, 128, 8
        $region32: #{decoder_forward.1} parent=11 // pred_fallthru
          _
        // Predicated region
        $region33: #{decoder_forward.1} parent=11 // pred_check
          %p254 = pneg %p168
        $region34: #{decoder_forward.1} parent=11 // pred_check_branch
          %256 = sbr.rel (%p254) target = $region36
        $region35: #{decoder_forward.1} parent=11 // pred_region
          _
        $region36: #{decoder_forward.1} parent=11 // pred_fallthru
          _
      $region12: #{decoder_forward.1} parent=5 // pred_fallthru
        _
      %p257 = scmp.lt.s32.totalorder %s16, 2
      // Predicated region
      $region37: #{decoder_forward.1} parent=5 // pred_check
        %p258 = pneg %p257
      $region38: #{decoder_forward.1} parent=5 // pred_check_branch
        %260 = sbr.rel (%p258) target = $region40
      $region39: #{decoder_forward.1} parent=5 // pred_region
        // Predicated region
        $region41: #{decoder_forward.1} parent=39 // pred_check
          %p261 = pneg %p36
        $region42: #{decoder_forward.1} parent=39 // pred_check_branch
          %263 = sbr.rel (%p261) target = $region44
        $region43: #{decoder_forward.1} parent=39 // pred_region
          %p264 = scmp.lt.s32.totalorder %s16, 1
          %s265 = scalar_select %p264, %s16, 1
          %s266 = smul.addr %s265, 2
          %s267 = smul.addr %s266, 8
          %s268 = scalar_lea.vmem %s0, %s267
        $region44: #{decoder_forward.1} parent=39 // pred_fallthru
          _
      $region40: #{decoder_forward.1} parent=5 // pred_fallthru
        _
      %p269 = scmp.le.s32.totalorder 1, %s16
      %p270 = scmp.lt.s32.totalorder %s16, 3
      %p271 = pnand %p269, %p270
      %p272 = pneg %p271
      // Predicated region
      $region45: #{decoder_forward.1} parent=5 // pred_check
        _
      $region46: #{decoder_forward.1} parent=5 // pred_check_branch
        %274 = sbr.rel (%p271) target = $region48
      $region47: #{decoder_forward.1} parent=5 // pred_region
        %s275 = ssub.s32 %s16, 1
        // Predicated region
        $region49: #{decoder_forward.1} parent=47 // pred_check
          %p276 = pneg %p63
        $region50: #{decoder_forward.1} parent=47 // pred_check_branch
          %278 = sbr.rel (%p276) target = $region52
        $region51: #{decoder_forward.1} parent=47 // pred_region
          %279 = dma.done [#allocation6], 32768
        $region52: #{decoder_forward.1} parent=47 // pred_fallthru
          _
        // Predicated region
        $region53: #{decoder_forward.1} parent=47 // pred_check
          %p280 = pneg %p105
        $region54: #{decoder_forward.1} parent=47 // pred_check_branch
          %282 = sbr.rel (%p280) target = $region56
        $region55: #{decoder_forward.1} parent=47 // pred_region
          %283 = dma.done [#allocation8], 16384
        $region56: #{decoder_forward.1} parent=47 // pred_fallthru
          _
        // Predicated region
        $region57: #{decoder_forward.1} parent=47 // pred_check
          %p284 = pneg %p147
        $region58: #{decoder_forward.1} parent=47 // pred_check_branch
          %286 = sbr.rel (%p284) target = $region60
        $region59: #{decoder_forward.1} parent=47 // pred_region
          %287 = dma.done [#allocation8], 16384
        $region60: #{decoder_forward.1} parent=47 // pred_fallthru
          _
        %p288 = scmp.lt.s32.totalorder %s21, 1
        %s289 = scalar_select %p288, %s21, 1
        %s290 = smul.addr %s289, 2
        %s291 = smul.addr %s290, 8
        %s292 = scalar_lea.vmem %s0, %s291
        %p293 = pneg %p42
        %p294 = pneg %p39
        %p295 = pneg %p63
        %p296 = pneg %p60
        %p297 = pneg %p84
        %p298 = pneg %p81
        %p299 = pneg %p105
        %p300 = pneg %p102
        %p301 = pneg %p126
        %p302 = pneg %p123
        %p303 = pneg %p147
        %p304 = pneg %p144
        %p305 = pneg %p168
        %p306 = pneg %p165
        %p307 = pneg %p194
        %p308 = pneg %p191
        %p309 = scmp.lt.s32.totalorder %s21, 1
        %s310 = scalar_select %p309, %s21, 1
        %s311 = smul.addr %s310, 7
        %s312 = smul.addr %s311, 8
        %s313 = scalar_lea.vmem %s7, %s312
        %p314 = scmp.lt.s32.totalorder %s21, 1
        %s315 = scalar_select %p314, %s21, 1
        %s316 = smul.addr %s315, 2
        %s317 = smul.addr %s316, 8
        %s318 = scalar_lea.vmem %s0, %s317
        %p319 = scmp.lt.s32.totalorder %s21, 1
        %s320 = scalar_select %p319, %s21, 1
        %s321 = smul.addr %s320, 7
        %s322 = smul.addr %s321, 8
        %s323 = scalar_lea.vmem %s7, %s322
        %v324 = vld [vmem:[%s318] sm:$0xff]
        %v325 = vld [vmem:[%s318 + $0x8] sm:$0xff]
        %v326 = vld [vmem:[#allocation5] sm:$0xff]
        %v327 = vld [vmem:[#allocation5 + $0x8] sm:$0xff]
        %v328 = vld [vmem:[#allocation5 + $0x10] sm:$0xff]
        %v329 = vld [vmem:[#allocation5 + $0x18] sm:$0xff]
        %v330 = vld [vmem:[#allocation5 + $0x20] sm:$0xff]
        %v331 = vld [vmem:[#allocation5 + $0x28] sm:$0xff]
        %v332 = vld [vmem:[#allocation5 + $0x30] sm:$0xff]
        %v333 = vld [vmem:[#allocation5 + $0x38] sm:$0xff]
        %v334 = vld [vmem:[#allocation5 + $0x40] sm:$0xff]
        %v335 = vld [vmem:[#allocation5 + $0x48] sm:$0xff]
        %v336 = vld [vmem:[#allocation5 + $0x50] sm:$0xff]
        %v337 = vld [vmem:[#allocation5 + $0x58] sm:$0xff]
        %v338 = vld [vmem:[#allocation5 + $0x60] sm:$0xff]
        %v339 = vld [vmem:[#allocation5 + $0x68] sm:$0xff]
        %v340 = vld [vmem:[#allocation5 + $0x70] sm:$0xff]
        %v341 = vld [vmem:[#allocation5 + $0x78] sm:$0xff]
        %v342 = vld [vmem:[#allocation5 + $0x80] sm:$0xff]
        %v343 = vld [vmem:[#allocation5 + $0x88] sm:$0xff]
        %v344 = vld [vmem:[#allocation5 + $0x90] sm:$0xff]
        %v345 = vld [vmem:[#allocation5 + $0x98] sm:$0xff]
        %v346 = vld [vmem:[#allocation5 + $0xa0] sm:$0xff]
        %v347 = vld [vmem:[#allocation5 + $0xa8] sm:$0xff]
        %v348 = vld [vmem:[#allocation5 + $0xb0] sm:$0xff]
        %v349 = vld [vmem:[#allocation5 + $0xb8] sm:$0xff]
        %v350 = vld [vmem:[#allocation5 + $0xc0] sm:$0xff]
        %v351 = vld [vmem:[#allocation5 + $0xc8] sm:$0xff]
        %v352 = vld [vmem:[#allocation5 + $0xd0] sm:$0xff]
        %v353 = vld [vmem:[#allocation5 + $0xd8] sm:$0xff]
        %v354 = vld [vmem:[#allocation5 + $0xe0] sm:$0xff]
        %v355 = vld [vmem:[#allocation5 + $0xe8] sm:$0xff]
        %v356 = vld [vmem:[#allocation5 + $0xf0] sm:$0xff]
        %v357 = vld [vmem:[#allocation5 + $0xf8] sm:$0xff]
        %v358 = vld [vmem:[%s2] sm:$0x1]
        %v359 = vlaneseq
        %v360 = vshrl.u32 %v359, 7
        %v361 = vsub.s32 0, %v360
        %v362 = vrot.slane %v358, %v361
        %363 = vmatprep.subr.mxu0 0.0
        %364 = vmatpush1.msra.mxu0 %v326
        %365 = vmatprep.subr.mxu0 0.0
        %366 = vmatpush1.msra.mxu0 %v327
        %367 = vmatprep.subr.mxu0 0.0
        %368 = vmatpush1.msra.mxu0 %v328
        %369 = vmatprep.subr.mxu0 0.0
        %370 = vmatpush1.msra.mxu0 %v329
        %371 = vmatprep.subr.mxu0 0.0
        %372 = vmatpush1.msra.mxu0 %v330
        %373 = vmatprep.subr.mxu0 0.0
        %374 = vmatpush1.msra.mxu0 %v331
        %375 = vmatprep.subr.mxu0 0.0
        %376 = vmatpush1.msra.mxu0 %v332
        %377 = vmatprep.subr.mxu0 0.0
        %378 = vmatpush1.msra.mxu0 %v333
        %379 = vmatprep.subr.mxu0 0.0
        %380 = vmatpush1.msra.mxu0 %v334
        %381 = vmatprep.subr.mxu0 0.0
        %382 = vmatpush1.msra.mxu0 %v335
        %383 = vmatprep.subr.mxu0 0.0
        %384 = vmatpush1.msra.mxu0 %v336
        %385 = vmatprep.subr.mxu0 0.0
        %386 = vmatpush1.msra.mxu0 %v337
        %387 = vmatprep.subr.mxu0 0.0
        %388 = vmatpush1.msra.mxu0 %v338
        %389 = vmatprep.subr.mxu0 0.0
        %390 = vmatpush1.msra.mxu0 %v339
        %391 = vmatprep.subr.mxu0 0.0
        %392 = vmatpush1.msra.mxu0 %v340
        %393 = vmatprep.subr.mxu0 0.0
        %394 = vmatpush1.msra.mxu0 %v341
        %395 = vmatprep.subr.mxu0 0.0
        %396 = vmatpush1.msra.mxu0 %v342
        %397 = vmatprep.subr.mxu0 0.0
        %398 = vmatpush1.msra.mxu0 %v343
        %399 = vmatprep.subr.mxu0 0.0
        %400 = vmatpush1.msra.mxu0 %v344
        %401 = vmatprep.subr.mxu0 0.0
        %402 = vmatpush1.msra.mxu0 %v345
        %403 = vmatprep.subr.mxu0 0.0
        %404 = vmatpush1.msra.mxu0 %v346
        %405 = vmatprep.subr.mxu0 0.0
        %406 = vmatpush1.msra.mxu0 %v347
        %407 = vmatprep.subr.mxu0 0.0
        %408 = vmatpush1.msra.mxu0 %v348
        %409 = vmatprep.subr.mxu0 0.0
        %410 = vmatpush1.msra.mxu0 %v349
        %411 = vmatprep.subr.mxu0 0.0
        %412 = vmatpush1.msra.mxu0 %v350
        %413 = vmatprep.subr.mxu0 0.0
        %414 = vmatpush1.msra.mxu0 %v351
        %415 = vmatprep.subr.mxu0 0.0
        %416 = vmatpush1.msra.mxu0 %v352
        %417 = vmatprep.subr.mxu0 0.0
        %418 = vmatpush1.msra.mxu0 %v353
        %419 = vmatprep.subr.mxu0 0.0
        %420 = vmatpush1.msra.mxu0 %v354
        %421 = vmatprep.subr.mxu0 0.0
        %422 = vmatpush1.msra.mxu0 %v355
        %423 = vmatprep.subr.mxu0 0.0
        %424 = vmatpush1.msra.mxu0 %v356
        %425 = vmatprep.subr.mxu0 0.0
        %426 = vmatpush1.msra.mxu0 %v357
        %427 = vmatprep.mubr.f32.mxu0 %v325
        %428 = vmatmul.mubr.f32.gmra.mrb[0].mxu0 %v324
        %v429 = vpop.f32.mrb[0].mxu0
        %v430 = vadd.f32 %v362, %v429
        %v431 = vpop.f32.mrb[0].mxu0
        %432 = vdwg.mxu0
        %v433 = vmax.f32 %v430, 0.0
        %434 = vst [vmem:[#allocation2] sm:$0xff] %v433
        %s435 = scalar_lea.vmem [#allocation5], 256
        %v436 = vld [vmem:[%s435] sm:$0xff]
        %v437 = vld [vmem:[%s435 + $0x8] sm:$0xff]
        %v438 = vld [vmem:[%s435 + $0x10] sm:$0xff]
        %v439 = vld [vmem:[%s435 + $0x18] sm:$0xff]
        %v440 = vld [vmem:[%s435 + $0x20] sm:$0xff]
        %v441 = vld [vmem:[%s435 + $0x28] sm:$0xff]
        %v442 = vld [vmem:[%s435 + $0x30] sm:$0xff]
        %v443 = vld [vmem:[%s435 + $0x38] sm:$0xff]
        %v444 = vld [vmem:[%s435 + $0x40] sm:$0xff]
        %v445 = vld [vmem:[%s435 + $0x48] sm:$0xff]
        %v446 = vld [vmem:[%s435 + $0x50] sm:$0xff]
        %v447 = vld [vmem:[%s435 + $0x58] sm:$0xff]
        %v448 = vld [vmem:[%s435 + $0x60] sm:$0xff]
        %v449 = vld [vmem:[%s435 + $0x68] sm:$0xff]
        %v450 = vld [vmem:[%s435 + $0x70] sm:$0xff]
        %v451 = vld [vmem:[%s435 + $0x78] sm:$0xff]
        %v452 = vld [vmem:[%s435 + $0x80] sm:$0xff]
        %v453 = vld [vmem:[%s435 + $0x88] sm:$0xff]
        %v454 = vld [vmem:[%s435 + $0x90] sm:$0xff]
        %v455 = vld [vmem:[%s435 + $0x98] sm:$0xff]
        %v456 = vld [vmem:[%s435 + $0xa0] sm:$0xff]
        %v457 = vld [vmem:[%s435 + $0xa8] sm:$0xff]
        %v458 = vld [vmem:[%s435 + $0xb0] sm:$0xff]
        %v459 = vld [vmem:[%s435 + $0xb8] sm:$0xff]
        %v460 = vld [vmem:[%s435 + $0xc0] sm:$0xff]
        %v461 = vld [vmem:[%s435 + $0xc8] sm:$0xff]
        %v462 = vld [vmem:[%s435 + $0xd0] sm:$0xff]
        %v463 = vld [vmem:[%s435 + $0xd8] sm:$0xff]
        %v464 = vld [vmem:[%s435 + $0xe0] sm:$0xff]
        %v465 = vld [vmem:[%s435 + $0xe8] sm:$0xff]
        %v466 = vld [vmem:[%s435 + $0xf0] sm:$0xff]
        %v467 = vld [vmem:[%s435 + $0xf8] sm:$0xff]
        %v468 = vld [vmem:[%s2 + $0x1] sm:$0x1]
        %v469 = vlaneseq
        %v470 = vshrl.u32 %v469, 7
        %v471 = vsub.s32 0, %v470
        %v472 = vrot.slane %v468, %v471
        %473 = vmatprep.subr.mxu0 0.0
        %474 = vmatpush1.msra.mxu0 %v436
        %475 = vmatprep.subr.mxu0 0.0
        %476 = vmatpush1.msra.mxu0 %v437
        %477 = vmatprep.subr.mxu0 0.0
        %478 = vmatpush1.msra.mxu0 %v438
        %479 = vmatprep.subr.mxu0 0.0
        %480 = vmatpush1.msra.mxu0 %v439
        %481 = vmatprep.subr.mxu0 0.0
        %482 = vmatpush1.msra.mxu0 %v440
        %483 = vmatprep.subr.mxu0 0.0
        %484 = vmatpush1.msra.mxu0 %v441
        %485 = vmatprep.subr.mxu0 0.0
        %486 = vmatpush1.msra.mxu0 %v442
        %487 = vmatprep.subr.mxu0 0.0
        %488 = vmatpush1.msra.mxu0 %v443
        %489 = vmatprep.subr.mxu0 0.0
        %490 = vmatpush1.msra.mxu0 %v444
        %491 = vmatprep.subr.mxu0 0.0
        %492 = vmatpush1.msra.mxu0 %v445
        %493 = vmatprep.subr.mxu0 0.0
        %494 = vmatpush1.msra.mxu0 %v446
        %495 = vmatprep.subr.mxu0 0.0
        %496 = vmatpush1.msra.mxu0 %v447
        %497 = vmatprep.subr.mxu0 0.0
        %498 = vmatpush1.msra.mxu0 %v448
        %499 = vmatprep.subr.mxu0 0.0
        %500 = vmatpush1.msra.mxu0 %v449
        %501 = vmatprep.subr.mxu0 0.0
        %502 = vmatpush1.msra.mxu0 %v450
        %503 = vmatprep.subr.mxu0 0.0
        %504 = vmatpush1.msra.mxu0 %v451
        %505 = vmatprep.subr.mxu0 0.0
        %506 = vmatpush1.msra.mxu0 %v452
        %507 = vmatprep.subr.mxu0 0.0
        %508 = vmatpush1.msra.mxu0 %v453
        %509 = vmatprep.subr.mxu0 0.0
        %510 = vmatpush1.msra.mxu0 %v454
        %511 = vmatprep.subr.mxu0 0.0
        %512 = vmatpush1.msra.mxu0 %v455
        %513 = vmatprep.subr.mxu0 0.0
        %514 = vmatpush1.msra.mxu0 %v456
        %515 = vmatprep.subr.mxu0 0.0
        %516 = vmatpush1.msra.mxu0 %v457
        %517 = vmatprep.subr.mxu0 0.0
        %518 = vmatpush1.msra.mxu0 %v458
        %519 = vmatprep.subr.mxu0 0.0
        %520 = vmatpush1.msra.mxu0 %v459
        %521 = vmatprep.subr.mxu0 0.0
        %522 = vmatpush1.msra.mxu0 %v460
        %523 = vmatprep.subr.mxu0 0.0
        %524 = vmatpush1.msra.mxu0 %v461
        %525 = vmatprep.subr.mxu0 0.0
        %526 = vmatpush1.msra.mxu0 %v462
        %527 = vmatprep.subr.mxu0 0.0
        %528 = vmatpush1.msra.mxu0 %v463
        %529 = vmatprep.subr.mxu0 0.0
        %530 = vmatpush1.msra.mxu0 %v464
        %531 = vmatprep.subr.mxu0 0.0
        %532 = vmatpush1.msra.mxu0 %v465
        %533 = vmatprep.subr.mxu0 0.0
        %534 = vmatpush1.msra.mxu0 %v466
        %535 = vmatprep.subr.mxu0 0.0
        %536 = vmatpush1.msra.mxu0 %v467
        %537 = vmatprep.mubr.f32.mxu0 %v325
        %538 = vmatmul.mubr.f32.gmra.mrb[0].mxu0 %v324
        %v539 = vpop.f32.mrb[0].mxu0
        %v540 = vadd.f32 %v472, %v539
        %v541 = vpop.f32.mrb[0].mxu0
        %542 = vdwg.mxu0
        %v543 = vmax.f32 %v540, 0.0
        %544 = vst [vmem:[#allocation2 + $0x10] sm:$0xff] %v543
        %545 = vst [vmem:[#allocation2 + $0x8] sm:$0xff] %v543
        %s546 = scalar_lea.vmem [#allocation5], 512
        %v547 = vld [vmem:[%s546] sm:$0xff]
        %v548 = vld [vmem:[%s546 + $0x8] sm:$0xff]
        %v549 = vld [vmem:[%s546 + $0x10] sm:$0xff]
        %v550 = vld [vmem:[%s546 + $0x18] sm:$0xff]
        %v551 = vld [vmem:[%s546 + $0x20] sm:$0xff]
        %v552 = vld [vmem:[%s546 + $0x28] sm:$0xff]
        %v553 = vld [vmem:[%s546 + $0x30] sm:$0xff]
        %v554 = vld [vmem:[%s546 + $0x38] sm:$0xff]
        %v555 = vld [vmem:[%s546 + $0x40] sm:$0xff]
        %v556 = vld [vmem:[%s546 + $0x48] sm:$0xff]
        %v557 = vld [vmem:[%s546 + $0x50] sm:$0xff]
        %v558 = vld [vmem:[%s546 + $0x58] sm:$0xff]
        %v559 = vld [vmem:[%s546 + $0x60] sm:$0xff]
        %v560 = vld [vmem:[%s546 + $0x68] sm:$0xff]
        %v561 = vld [vmem:[%s546 + $0x70] sm:$0xff]
        %v562 = vld [vmem:[%s546 + $0x78] sm:$0xff]
        %v563 = vld [vmem:[%s546 + $0x80] sm:$0xff]
        %v564 = vld [vmem:[%s546 + $0x88] sm:$0xff]
        %v565 = vld [vmem:[%s546 + $0x90] sm:$0xff]
        %v566 = vld [vmem:[%s546 + $0x98] sm:$0xff]
        %v567 = vld [vmem:[%s546 + $0xa0] sm:$0xff]
        %v568 = vld [vmem:[%s546 + $0xa8] sm:$0xff]
        %v569 = vld [vmem:[%s546 + $0xb0] sm:$0xff]
        %v570 = vld [vmem:[%s546 + $0xb8] sm:$0xff]
        %v571 = vld [vmem:[%s546 + $0xc0] sm:$0xff]
        %v572 = vld [vmem:[%s546 + $0xc8] sm:$0xff]
        %v573 = vld [vmem:[%s546 + $0xd0] sm:$0xff]
        %v574 = vld [vmem:[%s546 + $0xd8] sm:$0xff]
        %v575 = vld [vmem:[%s546 + $0xe0] sm:$0xff]
        %v576 = vld [vmem:[%s546 + $0xe8] sm:$0xff]
        %v577 = vld [vmem:[%s546 + $0xf0] sm:$0xff]
        %v578 = vld [vmem:[%s546 + $0xf8] sm:$0xff]
        %v579 = vld [vmem:[%s2 + $0x2] sm:$0x1]
        %v580 = vlaneseq
        %v581 = vshrl.u32 %v580, 7
        %v582 = vsub.s32 0, %v581
        %v583 = vrot.slane %v579, %v582
        %584 = vmatprep.subr.mxu0 0.0
        %585 = vmatpush1.msra.mxu0 %v547
        %586 = vmatprep.subr.mxu0 0.0
        %587 = vmatpush1.msra.mxu0 %v548
        %588 = vmatprep.subr.mxu0 0.0
        %589 = vmatpush1.msra.mxu0 %v549
        %590 = vmatprep.subr.mxu0 0.0
        %591 = vmatpush1.msra.mxu0 %v550
        %592 = vmatprep.subr.mxu0 0.0
        %593 = vmatpush1.msra.mxu0 %v551
        %594 = vmatprep.subr.mxu0 0.0
        %595 = vmatpush1.msra.mxu0 %v552
        %596 = vmatprep.subr.mxu0 0.0
        %597 = vmatpush1.msra.mxu0 %v553
        %598 = vmatprep.subr.mxu0 0.0
        %599 = vmatpush1.msra.mxu0 %v554
        %600 = vmatprep.subr.mxu0 0.0
        %601 = vmatpush1.msra.mxu0 %v555
        %602 = vmatprep.subr.mxu0 0.0
        %603 = vmatpush1.msra.mxu0 %v556
        %604 = vmatprep.subr.mxu0 0.0
        %605 = vmatpush1.msra.mxu0 %v557
        %606 = vmatprep.subr.mxu0 0.0
        %607 = vmatpush1.msra.mxu0 %v558
        %608 = vmatprep.subr.mxu0 0.0
        %609 = vmatpush1.msra.mxu0 %v559
        %610 = vmatprep.subr.mxu0 0.0
        %611 = vmatpush1.msra.mxu0 %v560
        %612 = vmatprep.subr.mxu0 0.0
        %613 = vmatpush1.msra.mxu0 %v561
        %614 = vmatprep.subr.mxu0 0.0
        %615 = vmatpush1.msra.mxu0 %v562
        %616 = vmatprep.subr.mxu0 0.0
        %617 = vmatpush1.msra.mxu0 %v563
        %618 = vmatprep.subr.mxu0 0.0
        %619 = vmatpush1.msra.mxu0 %v564
        %620 = vmatprep.subr.mxu0 0.0
        %621 = vmatpush1.msra.mxu0 %v565
        %622 = vmatprep.subr.mxu0 0.0
        %623 = vmatpush1.msra.mxu0 %v566
        %624 = vmatprep.subr.mxu0 0.0
        %625 = vmatpush1.msra.mxu0 %v567
        %626 = vmatprep.subr.mxu0 0.0
        %627 = vmatpush1.msra.mxu0 %v568
        %628 = vmatprep.subr.mxu0 0.0
        %629 = vmatpush1.msra.mxu0 %v569
        %630 = vmatprep.subr.mxu0 0.0
        %631 = vmatpush1.msra.mxu0 %v570
        %632 = vmatprep.subr.mxu0 0.0
        %633 = vmatpush1.msra.mxu0 %v571
        %634 = vmatprep.subr.mxu0 0.0
        %635 = vmatpush1.msra.mxu0 %v572
        %636 = vmatprep.subr.mxu0 0.0
        %637 = vmatpush1.msra.mxu0 %v573
        %638 = vmatprep.subr.mxu0 0.0
        %639 = vmatpush1.msra.mxu0 %v574
        %640 = vmatprep.subr.mxu0 0.0
        %641 = vmatpush1.msra.mxu0 %v575
        %642 = vmatprep.subr.mxu0 0.0
        %643 = vmatpush1.msra.mxu0 %v576
        %644 = vmatprep.subr.mxu0 0.0
        %645 = vmatpush1.msra.mxu0 %v577
        %646 = vmatprep.subr.mxu0 0.0
        %647 = vmatpush1.msra.mxu0 %v578
        %648 = vmatprep.mubr.f32.mxu0 %v325
        %649 = vmatmul.mubr.f32.gmra.mrb[0].mxu0 %v324
        %v650 = vpop.f32.mrb[0].mxu0
        %v651 = vadd.f32 %v583, %v650
        %v652 = vpop.f32.mrb[0].mxu0
        %653 = vdwg.mxu0
        %v654 = vmax.f32 %v651, 0.0
        %655 = vst [vmem:[#allocation2 + $0x20] sm:$0xff] %v654
        %656 = vst [vmem:[#allocation2 + $0x18] sm:$0xff] %v654
        %s657 = scalar_lea.vmem [#allocation5], 768
        %v658 = vld [vmem:[%s657] sm:$0xff]
        %v659 = vld [vmem:[%s657 + $0x8] sm:$0xff]
        %v660 = vld [vmem:[%s657 + $0x10] sm:$0xff]
        %v661 = vld [vmem:[%s657 + $0x18] sm:$0xff]
        %v662 = vld [vmem:[%s657 + $0x20] sm:$0xff]
        %v663 = vld [vmem:[%s657 + $0x28] sm:$0xff]
        %v664 = vld [vmem:[%s657 + $0x30] sm:$0xff]
        %v665 = vld [vmem:[%s657 + $0x38] sm:$0xff]
        %v666 = vld [vmem:[%s657 + $0x40] sm:$0xff]
        %v667 = vld [vmem:[%s657 + $0x48] sm:$0xff]
        %v668 = vld [vmem:[%s657 + $0x50] sm:$0xff]
        %v669 = vld [vmem:[%s657 + $0x58] sm:$0xff]
        %v670 = vld [vmem:[%s657 + $0x60] sm:$0xff]
        %v671 = vld [vmem:[%s657 + $0x68] sm:$0xff]
        %v672 = vld [vmem:[%s657 + $0x70] sm:$0xff]
        %v673 = vld [vmem:[%s657 + $0x78] sm:$0xff]
        %v674 = vld [vmem:[%s657 + $0x80] sm:$0xff]
        %v675 = vld [vmem:[%s657 + $0x88] sm:$0xff]
        %v676 = vld [vmem:[%s657 + $0x90] sm:$0xff]
        %v677 = vld [vmem:[%s657 + $0x98] sm:$0xff]
        %v678 = vld [vmem:[%s657 + $0xa0] sm:$0xff]
        %v679 = vld [vmem:[%s657 + $0xa8] sm:$0xff]
        %v680 = vld [vmem:[%s657 + $0xb0] sm:$0xff]
        %v681 = vld [vmem:[%s657 + $0xb8] sm:$0xff]
        %v682 = vld [vmem:[%s657 + $0xc0] sm:$0xff]
        %v683 = vld [vmem:[%s657 + $0xc8] sm:$0xff]
        %v684 = vld [vmem:[%s657 + $0xd0] sm:$0xff]
        %v685 = vld [vmem:[%s657 + $0xd8] sm:$0xff]
        %v686 = vld [vmem:[%s657 + $0xe0] sm:$0xff]
        %v687 = vld [vmem:[%s657 + $0xe8] sm:$0xff]
        %v688 = vld [vmem:[%s657 + $0xf0] sm:$0xff]
        %v689 = vld [vmem:[%s657 + $0xf8] sm:$0xff]
        %v690 = vld [vmem:[%s2 + $0x3] sm:$0x1]
        %v691 = vlaneseq
        %v692 = vshrl.u32 %v691, 7
        %v693 = vsub.s32 0, %v692
        %v694 = vrot.slane %v690, %v693
        %695 = vmatprep.subr.mxu0 0.0
        %696 = vmatpush1.msra.mxu0 %v658
        %697 = vmatprep.subr.mxu0 0.0
        %698 = vmatpush1.msra.mxu0 %v659
        %699 = vmatprep.subr.mxu0 0.0
        %700 = vmatpush1.msra.mxu0 %v660
        %701 = vmatprep.subr.mxu0 0.0
        %702 = vmatpush1.msra.mxu0 %v661
        %703 = vmatprep.subr.mxu0 0.0
        %704 = vmatpush1.msra.mxu0 %v662
        %705 = vmatprep.subr.mxu0 0.0
        %706 = vmatpush1.msra.mxu0 %v663
        %707 = vmatprep.subr.mxu0 0.0
        %708 = vmatpush1.msra.mxu0 %v664
        %709 = vmatprep.subr.mxu0 0.0
        %710 = vmatpush1.msra.mxu0 %v665
        %711 = vmatprep.subr.mxu0 0.0
        %712 = vmatpush1.msra.mxu0 %v666
        %713 = vmatprep.subr.mxu0 0.0
        %714 = vmatpush1.msra.mxu0 %v667
        %715 = vmatprep.subr.mxu0 0.0
        %716 = vmatpush1.msra.mxu0 %v668
        %717 = vmatprep.subr.mxu0 0.0
        %718 = vmatpush1.msra.mxu0 %v669
        %719 = vmatprep.subr.mxu0 0.0
        %720 = vmatpush1.msra.mxu0 %v670
        %721 = vmatprep.subr.mxu0 0.0
        %722 = vmatpush1.msra.mxu0 %v671
        %723 = vmatprep.subr.mxu0 0.0
        %724 = vmatpush1.msra.mxu0 %v672
        %725 = vmatprep.subr.mxu0 0.0
        %726 = vmatpush1.msra.mxu0 %v673
        %727 = vmatprep.subr.mxu0 0.0
        %728 = vmatpush1.msra.mxu0 %v674
        %729 = vmatprep.subr.mxu0 0.0
        %730 = vmatpush1.msra.mxu0 %v675
        %731 = vmatprep.subr.mxu0 0.0
        %732 = vmatpush1.msra.mxu0 %v676
        %733 = vmatprep.subr.mxu0 0.0
        %734 = vmatpush1.msra.mxu0 %v677
        %735 = vmatprep.subr.mxu0 0.0
        %736 = vmatpush1.msra.mxu0 %v678
        %737 = vmatprep.subr.mxu0 0.0
        %738 = vmatpush1.msra.mxu0 %v679
        %739 = vmatprep.subr.mxu0 0.0
        %740 = vmatpush1.msra.mxu0 %v680
        %741 = vmatprep.subr.mxu0 0.0
        %742 = vmatpush1.msra.mxu0 %v681
        %743 = vmatprep.subr.mxu0 0.0
        %744 = vmatpush1.msra.mxu0 %v682
        %745 = vmatprep.subr.mxu0 0.0
        %746 = vmatpush1.msra.mxu0 %v683
        %747 = vmatprep.subr.mxu0 0.0
        %748 = vmatpush1.msra.mxu0 %v684
        %749 = vmatprep.subr.mxu0 0.0
        %750 = vmatpush1.msra.mxu0 %v685
        %751 = vmatprep.subr.mxu0 0.0
        %752 = vmatpush1.msra.mxu0 %v686
        %753 = vmatprep.subr.mxu0 0.0
        %754 = vmatpush1.msra.mxu0 %v687
        %755 = vmatprep.subr.mxu0 0.0
        %756 = vmatpush1.msra.mxu0 %v688
        %757 = vmatprep.subr.mxu0 0.0
        %758 = vmatpush1.msra.mxu0 %v689
        %759 = vmatprep.mubr.f32.mxu0 %v325
        %760 = vmatmul.mubr.f32.gmra.mrb[0].mxu0 %v324
        %v761 = vpop.f32.mrb[0].mxu0
        %v762 = vadd.f32 %v694, %v761
        %v763 = vpop.f32.mrb[0].mxu0
        %764 = vdwg.mxu0
        %v765 = vmax.f32 %v762, 0.0
        %766 = vst [vmem:[#allocation2 + $0x30] sm:$0xff] %v765
        %767 = vst [vmem:[#allocation2 + $0x28] sm:$0xff] %v765
        %s768 = scalar_lea.vmem [#allocation5], 1024
        %v769 = vld [vmem:[%s768] sm:$0xff]
        %v770 = vld [vmem:[%s768 + $0x8] sm:$0xff]
        %v771 = vld [vmem:[%s768 + $0x10] sm:$0xff]
        %v772 = vld [vmem:[%s768 + $0x18] sm:$0xff]
        %v773 = vld [vmem:[%s768 + $0x20] sm:$0xff]
        %v774 = vld [vmem:[%s768 + $0x28] sm:$0xff]
        %v775 = vld [vmem:[%s768 + $0x30] sm:$0xff]
        %v776 = vld [vmem:[%s768 + $0x38] sm:$0xff]
        %v777 = vld [vmem:[%s768 + $0x40] sm:$0xff]
        %v778 = vld [vmem:[%s768 + $0x48] sm:$0xff]
        %v779 = vld [vmem:[%s768 + $0x50] sm:$0xff]
        %v780 = vld [vmem:[%s768 + $0x58] sm:$0xff]
        %v781 = vld [vmem:[%s768 + $0x60] sm:$0xff]
        %v782 = vld [vmem:[%s768 + $0x68] sm:$0xff]
        %v783 = vld [vmem:[%s768 + $0x70] sm:$0xff]
        %v784 = vld [vmem:[%s768 + $0x78] sm:$0xff]
        %v785 = vld [vmem:[%s768 + $0x80] sm:$0xff]
        %v786 = vld [vmem:[%s768 + $0x88] sm:$0xff]
        %v787 = vld [vmem:[%s768 + $0x90] sm:$0xff]
        %v788 = vld [vmem:[%s768 + $0x98] sm:$0xff]
        %v789 = vld [vmem:[%s768 + $0xa0] sm:$0xff]
        %v790 = vld [vmem:[%s768 + $0xa8] sm:$0xff]
        %v791 = vld [vmem:[%s768 + $0xb0] sm:$0xff]
        %v792 = vld [vmem:[%s768 + $0xb8] sm:$0xff]
        %v793 = vld [vmem:[%s768 + $0xc0] sm:$0xff]
        %v794 = vld [vmem:[%s768 + $0xc8] sm:$0xff]
        %v795 = vld [vmem:[%s768 + $0xd0] sm:$0xff]
        %v796 = vld [vmem:[%s768 + $0xd8] sm:$0xff]
        %v797 = vld [vmem:[%s768 + $0xe0] sm:$0xff]
        %v798 = vld [vmem:[%s768 + $0xe8] sm:$0xff]
        %v799 = vld [vmem:[%s768 + $0xf0] sm:$0xff]
        %v800 = vld [vmem:[%s768 + $0xf8] sm:$0xff]
        %v801 = vld [vmem:[%s2 + $0x4] sm:$0x1]
        %v802 = vlaneseq
        %v803 = vshrl.u32 %v802, 7
        %v804 = vsub.s32 0, %v803
        %v805 = vrot.slane %v801, %v804
        %806 = vmatprep.subr.mxu0 0.0
        %807 = vmatpush1.msra.mxu0 %v769
        %808 = vmatprep.subr.mxu0 0.0
        %809 = vmatpush1.msra.mxu0 %v770
        %810 = vmatprep.subr.mxu0 0.0
        %811 = vmatpush1.msra.mxu0 %v771
        %812 = vmatprep.subr.mxu0 0.0
        %813 = vmatpush1.msra.mxu0 %v772
        %814 = vmatprep.subr.mxu0 0.0
        %815 = vmatpush1.msra.mxu0 %v773
        %816 = vmatprep.subr.mxu0 0.0
        %817 = vmatpush1.msra.mxu0 %v774
        %818 = vmatprep.subr.mxu0 0.0
        %819 = vmatpush1.msra.mxu0 %v775
        %820 = vmatprep.subr.mxu0 0.0
        %821 = vmatpush1.msra.mxu0 %v776
        %822 = vmatprep.subr.mxu0 0.0
        %823 = vmatpush1.msra.mxu0 %v777
        %824 = vmatprep.subr.mxu0 0.0
        %825 = vmatpush1.msra.mxu0 %v778
        %826 = vmatprep.subr.mxu0 0.0
        %827 = vmatpush1.msra.mxu0 %v779
        %828 = vmatprep.subr.mxu0 0.0
        %829 = vmatpush1.msra.mxu0 %v780
        %830 = vmatprep.subr.mxu0 0.0
        %831 = vmatpush1.msra.mxu0 %v781
        %832 = vmatprep.subr.mxu0 0.0
        %833 = vmatpush1.msra.mxu0 %v782
        %834 = vmatprep.subr.mxu0 0.0
        %835 = vmatpush1.msra.mxu0 %v783
        %836 = vmatprep.subr.mxu0 0.0
        %837 = vmatpush1.msra.mxu0 %v784
        %838 = vmatprep.subr.mxu0 0.0
        %839 = vmatpush1.msra.mxu0 %v785
        %840 = vmatprep.subr.mxu0 0.0
        %841 = vmatpush1.msra.mxu0 %v786
        %842 = vmatprep.subr.mxu0 0.0
        %843 = vmatpush1.msra.mxu0 %v787
        %844 = vmatprep.subr.mxu0 0.0
        %845 = vmatpush1.msra.mxu0 %v788
        %846 = vmatprep.subr.mxu0 0.0
        %847 = vmatpush1.msra.mxu0 %v789
        %848 = vmatprep.subr.mxu0 0.0
        %849 = vmatpush1.msra.mxu0 %v790
        %850 = vmatprep.subr.mxu0 0.0
        %851 = vmatpush1.msra.mxu0 %v791
        %852 = vmatprep.subr.mxu0 0.0
        %853 = vmatpush1.msra.mxu0 %v792
        %854 = vmatprep.subr.mxu0 0.0
        %855 = vmatpush1.msra.mxu0 %v793
        %856 = vmatprep.subr.mxu0 0.0
        %857 = vmatpush1.msra.mxu0 %v794
        %858 = vmatprep.subr.mxu0 0.0
        %859 = vmatpush1.msra.mxu0 %v795
        %860 = vmatprep.subr.mxu0 0.0
        %861 = vmatpush1.msra.mxu0 %v796
        %862 = vmatprep.subr.mxu0 0.0
        %863 = vmatpush1.msra.mxu0 %v797
        %864 = vmatprep.subr.mxu0 0.0
        %865 = vmatpush1.msra.mxu0 %v798
        %866 = vmatprep.subr.mxu0 0.0
        %867 = vmatpush1.msra.mxu0 %v799
        %868 = vmatprep.subr.mxu0 0.0
        %869 = vmatpush1.msra.mxu0 %v800
        %870 = vmatprep.mubr.f32.mxu0 %v325
        %871 = vmatmul.mubr.f32.gmra.mrb[0].mxu0 %v324
        %v872 = vpop.f32.mrb[0].mxu0
        %v873 = vadd.f32 %v805, %v872
        %v874 = vpop.f32.mrb[0].mxu0
        %875 = vdwg.mxu0
        %v876 = vmax.f32 %v873, 0.0
        %877 = vst [vmem:[#allocation2 + $0x40] sm:$0xff] %v876
        %878 = vst [vmem:[#allocation2 + $0x38] sm:$0xff] %v876
        %s879 = scalar_lea.vmem [#allocation5], 1280
        %v880 = vld [vmem:[%s879] sm:$0xff]
        %v881 = vld [vmem:[%s879 + $0x8] sm:$0xff]
        %v882 = vld [vmem:[%s879 + $0x10] sm:$0xff]
        %v883 = vld [vmem:[%s879 + $0x18] sm:$0xff]
        %v884 = vld [vmem:[%s879 + $0x20] sm:$0xff]
        %v885 = vld [vmem:[%s879 + $0x28] sm:$0xff]
        %v886 = vld [vmem:[%s879 + $0x30] sm:$0xff]
        %v887 = vld [vmem:[%s879 + $0x38] sm:$0xff]
        %v888 = vld [vmem:[%s879 + $0x40] sm:$0xff]
        %v889 = vld [vmem:[%s879 + $0x48] sm:$0xff]
        %v890 = vld [vmem:[%s879 + $0x50] sm:$0xff]
        %v891 = vld [vmem:[%s879 + $0x58] sm:$0xff]
        %v892 = vld [vmem:[%s879 + $0x60] sm:$0xff]
        %v893 = vld [vmem:[%s879 + $0x68] sm:$0xff]
        %v894 = vld [vmem:[%s879 + $0x70] sm:$0xff]
        %v895 = vld [vmem:[%s879 + $0x78] sm:$0xff]
        %v896 = vld [vmem:[%s879 + $0x80] sm:$0xff]
        %v897 = vld [vmem:[%s879 + $0x88] sm:$0xff]
        %v898 = vld [vmem:[%s879 + $0x90] sm:$0xff]
        %v899 = vld [vmem:[%s879 + $0x98] sm:$0xff]
        %v900 = vld [vmem:[%s879 + $0xa0] sm:$0xff]
        %v901 = vld [vmem:[%s879 + $0xa8] sm:$0xff]
        %v902 = vld [vmem:[%s879 + $0xb0] sm:$0xff]
        %v903 = vld [vmem:[%s879 + $0xb8] sm:$0xff]
        %v904 = vld [vmem:[%s879 + $0xc0] sm:$0xff]
        %v905 = vld [vmem:[%s879 + $0xc8] sm:$0xff]
        %v906 = vld [vmem:[%s879 + $0xd0] sm:$0xff]
        %v907 = vld [vmem:[%s879 + $0xd8] sm:$0xff]
        %v908 = vld [vmem:[%s879 + $0xe0] sm:$0xff]
        %v909 = vld [vmem:[%s879 + $0xe8] sm:$0xff]
        %v910 = vld [vmem:[%s879 + $0xf0] sm:$0xff]
        %v911 = vld [vmem:[%s879 + $0xf8] sm:$0xff]
        %v912 = vld [vmem:[%s2 + $0x5] sm:$0x1]
        %v913 = vlaneseq
        %v914 = vshrl.u32 %v913, 7
        %v915 = vsub.s32 0, %v914
        %v916 = vrot.slane %v912, %v915
        %917 = vmatprep.subr.mxu0 0.0
        %918 = vmatpush1.msra.mxu0 %v880
        %919 = vmatprep.subr.mxu0 0.0
        %920 = vmatpush1.msra.mxu0 %v881
        %921 = vmatprep.subr.mxu0 0.0
        %922 = vmatpush1.msra.mxu0 %v882
        %923 = vmatprep.subr.mxu0 0.0
        %924 = vmatpush1.msra.mxu0 %v883
        %925 = vmatprep.subr.mxu0 0.0
        %926 = vmatpush1.msra.mxu0 %v884
        %927 = vmatprep.subr.mxu0 0.0
        %928 = vmatpush1.msra.mxu0 %v885
        %929 = vmatprep.subr.mxu0 0.0
        %930 = vmatpush1.msra.mxu0 %v886
        %931 = vmatprep.subr.mxu0 0.0
        %932 = vmatpush1.msra.mxu0 %v887
        %933 = vmatprep.subr.mxu0 0.0
        %934 = vmatpush1.msra.mxu0 %v888
        %935 = vmatprep.subr.mxu0 0.0
        %936 = vmatpush1.msra.mxu0 %v889
        %937 = vmatprep.subr.mxu0 0.0
        %938 = vmatpush1.msra.mxu0 %v890
        %939 = vmatprep.subr.mxu0 0.0
        %940 = vmatpush1.msra.mxu0 %v891
        %941 = vmatprep.subr.mxu0 0.0
        %942 = vmatpush1.msra.mxu0 %v892
        %943 = vmatprep.subr.mxu0 0.0
        %944 = vmatpush1.msra.mxu0 %v893
        %945 = vmatprep.subr.mxu0 0.0
        %946 = vmatpush1.msra.mxu0 %v894
        %947 = vmatprep.subr.mxu0 0.0
        %948 = vmatpush1.msra.mxu0 %v895
        %949 = vmatprep.subr.mxu0 0.0
        %950 = vmatpush1.msra.mxu0 %v896
        %951 = vmatprep.subr.mxu0 0.0
        %952 = vmatpush1.msra.mxu0 %v897
        %953 = vmatprep.subr.mxu0 0.0
        %954 = vmatpush1.msra.mxu0 %v898
        %955 = vmatprep.subr.mxu0 0.0
        %956 = vmatpush1.msra.mxu0 %v899
        %957 = vmatprep.subr.mxu0 0.0
        %958 = vmatpush1.msra.mxu0 %v900
        %959 = vmatprep.subr.mxu0 0.0
        %960 = vmatpush1.msra.mxu0 %v901
        %961 = vmatprep.subr.mxu0 0.0
        %962 = vmatpush1.msra.mxu0 %v902
        %963 = vmatprep.subr.mxu0 0.0
        %964 = vmatpush1.msra.mxu0 %v903
        %965 = vmatprep.subr.mxu0 0.0
        %966 = vmatpush1.msra.mxu0 %v904
        %967 = vmatprep.subr.mxu0 0.0
        %968 = vmatpush1.msra.mxu0 %v905
        %969 = vmatprep.subr.mxu0 0.0
        %970 = vmatpush1.msra.mxu0 %v906
        %971 = vmatprep.subr.mxu0 0.0
        %972 = vmatpush1.msra.mxu0 %v907
        %973 = vmatprep.subr.mxu0 0.0
        %974 = vmatpush1.msra.mxu0 %v908
        %975 = vmatprep.subr.mxu0 0.0
        %976 = vmatpush1.msra.mxu0 %v909
        %977 = vmatprep.subr.mxu0 0.0
        %978 = vmatpush1.msra.mxu0 %v910
        %979 = vmatprep.subr.mxu0 0.0
        %980 = vmatpush1.msra.mxu0 %v911
        %981 = vmatprep.mubr.f32.mxu0 %v325
        %982 = vmatmul.mubr.f32.gmra.mrb[0].mxu0 %v324
        %v983 = vpop.f32.mrb[0].mxu0
        %v984 = vadd.f32 %v916, %v983
        %v985 = vpop.f32.mrb[0].mxu0
        %986 = vdwg.mxu0
        %v987 = vmax.f32 %v984, 0.0
        %988 = vst [vmem:[#allocation2 + $0x50] sm:$0xff] %v987
        %989 = vst [vmem:[#allocation2 + $0x48] sm:$0xff] %v987
        %s990 = scalar_lea.vmem [#allocation5], 1536
        %v991 = vld [vmem:[%s990] sm:$0xff]
        %v992 = vld [vmem:[%s990 + $0x8] sm:$0xff]
        %v993 = vld [vmem:[%s990 + $0x10] sm:$0xff]
        %v994 = vld [vmem:[%s990 + $0x18] sm:$0xff]
        %v995 = vld [vmem:[%s990 + $0x20] sm:$0xff]
        %v996 = vld [vmem:[%s990 + $0x28] sm:$0xff]
        %v997 = vld [vmem:[%s990 + $0x30] sm:$0xff]
        %v998 = vld [vmem:[%s990 + $0x38] sm:$0xff]
        %v999 = vld [vmem:[%s990 + $0x40] sm:$0xff]
        %v1000 = vld [vmem:[%s990 + $0x48] sm:$0xff]
        %v1001 = vld [vmem:[%s990 + $0x50] sm:$0xff]
        %v1002 = vld [vmem:[%s990 + $0x58] sm:$0xff]
        %v1003 = vld [vmem:[%s990 + $0x60] sm:$0xff]
        %v1004 = vld [vmem:[%s990 + $0x68] sm:$0xff]
        %v1005 = vld [vmem:[%s990 + $0x70] sm:$0xff]
        %v1006 = vld [vmem:[%s990 + $0x78] sm:$0xff]
        %v1007 = vld [vmem:[%s990 + $0x80] sm:$0xff]
        %v1008 = vld [vmem:[%s990 + $0x88] sm:$0xff]
        %v1009 = vld [vmem:[%s990 + $0x90] sm:$0xff]
        %v1010 = vld [vmem:[%s990 + $0x98] sm:$0xff]
        %v1011 = vld [vmem:[%s990 + $0xa0] sm:$0xff]
        %v1012 = vld [vmem:[%s990 + $0xa8] sm:$0xff]
        %v1013 = vld [vmem:[%s990 + $0xb0] sm:$0xff]
        %v1014 = vld [vmem:[%s990 + $0xb8] sm:$0xff]
        %v1015 = vld [vmem:[%s990 + $0xc0] sm:$0xff]
        %v1016 = vld [vmem:[%s990 + $0xc8] sm:$0xff]
        %v1017 = vld [vmem:[%s990 + $0xd0] sm:$0xff]
        %v1018 = vld [vmem:[%s990 + $0xd8] sm:$0xff]
        %v1019 = vld [vmem:[%s990 + $0xe0] sm:$0xff]
        %v1020 = vld [vmem:[%s990 + $0xe8] sm:$0xff]
        %v1021 = vld [vmem:[%s990 + $0xf0] sm:$0xff]
        %v1022 = vld [vmem:[%s990 + $0xf8] sm:$0xff]
        %v1023 = vld [vmem:[%s2 + $0x6] sm:$0x1]
        %v1024 = vlaneseq
        %v1025 = vshrl.u32 %v1024, 7
        %v1026 = vsub.s32 0, %v1025
        %v1027 = vrot.slane %v1023, %v1026
        %1028 = vmatprep.subr.mxu0 0.0
        %1029 = vmatpush1.msra.mxu0 %v991
        %1030 = vmatprep.subr.mxu0 0.0
        %1031 = vmatpush1.msra.mxu0 %v992
        %1032 = vmatprep.subr.mxu0 0.0
        %1033 = vmatpush1.msra.mxu0 %v993
        %1034 = vmatprep.subr.mxu0 0.0
        %1035 = vmatpush1.msra.mxu0 %v994
        %1036 = vmatprep.subr.mxu0 0.0
        %1037 = vmatpush1.msra.mxu0 %v995
        %1038 = vmatprep.subr.mxu0 0.0
        %1039 = vmatpush1.msra.mxu0 %v996
        %1040 = vmatprep.subr.mxu0 0.0
        %1041 = vmatpush1.msra.mxu0 %v997
        %1042 = vmatprep.subr.mxu0 0.0
        %1043 = vmatpush1.msra.mxu0 %v998
        %1044 = vmatprep.subr.mxu0 0.0
        %1045 = vmatpush1.msra.mxu0 %v999
        %1046 = vmatprep.subr.mxu0 0.0
        %1047 = vmatpush1.msra.mxu0 %v1000
        %1048 = vmatprep.subr.mxu0 0.0
        %1049 = vmatpush1.msra.mxu0 %v1001
        %1050 = vmatprep.subr.mxu0 0.0
        %1051 = vmatpush1.msra.mxu0 %v1002
        %1052 = vmatprep.subr.mxu0 0.0
        %1053 = vmatpush1.msra.mxu0 %v1003
        %1054 = vmatprep.subr.mxu0 0.0
        %1055 = vmatpush1.msra.mxu0 %v1004
        %1056 = vmatprep.subr.mxu0 0.0
        %1057 = vmatpush1.msra.mxu0 %v1005
        %1058 = vmatprep.subr.mxu0 0.0
        %1059 = vmatpush1.msra.mxu0 %v1006
        %1060 = vmatprep.subr.mxu0 0.0
        %1061 = vmatpush1.msra.mxu0 %v1007
        %1062 = vmatprep.subr.mxu0 0.0
        %1063 = vmatpush1.msra.mxu0 %v1008
        %1064 = vmatprep.subr.mxu0 0.0
        %1065 = vmatpush1.msra.mxu0 %v1009
        %1066 = vmatprep.subr.mxu0 0.0
        %1067 = vmatpush1.msra.mxu0 %v1010
        %1068 = vmatprep.subr.mxu0 0.0
        %1069 = vmatpush1.msra.mxu0 %v1011
        %1070 = vmatprep.subr.mxu0 0.0
        %1071 = vmatpush1.msra.mxu0 %v1012
        %1072 = vmatprep.subr.mxu0 0.0
        %1073 = vmatpush1.msra.mxu0 %v1013
        %1074 = vmatprep.subr.mxu0 0.0
        %1075 = vmatpush1.msra.mxu0 %v1014
        %1076 = vmatprep.subr.mxu0 0.0
        %1077 = vmatpush1.msra.mxu0 %v1015
        %1078 = vmatprep.subr.mxu0 0.0
        %1079 = vmatpush1.msra.mxu0 %v1016
        %1080 = vmatprep.subr.mxu0 0.0
        %1081 = vmatpush1.msra.mxu0 %v1017
        %1082 = vmatprep.subr.mxu0 0.0
        %1083 = vmatpush1.msra.mxu0 %v1018
        %1084 = vmatprep.subr.mxu0 0.0
        %1085 = vmatpush1.msra.mxu0 %v1019
        %1086 = vmatprep.subr.mxu0 0.0
        %1087 = vmatpush1.msra.mxu0 %v1020
        %1088 = vmatprep.subr.mxu0 0.0
        %1089 = vmatpush1.msra.mxu0 %v1021
        %1090 = vmatprep.subr.mxu0 0.0
        %1091 = vmatpush1.msra.mxu0 %v1022
        %1092 = vmatprep.mubr.f32.mxu0 %v325
        %1093 = vmatmul.mubr.f32.gmra.mrb[0].mxu0 %v324
        %v1094 = vpop.f32.mrb[0].mxu0
        %v1095 = vadd.f32 %v1027, %v1094
        %v1096 = vpop.f32.mrb[0].mxu0
        %1097 = vdwg.mxu0
        %v1098 = vmax.f32 %v1095, 0.0
        %1099 = vst [vmem:[#allocation2 + $0x60] sm:$0xff] %v1098
        %1100 = vst [vmem:[#allocation2 + $0x58] sm:$0xff] %v1098
        %s1101 = scalar_lea.vmem [#allocation5], 1792
        %v1102 = vld [vmem:[%s1101] sm:$0xff]
        %v1103 = vld [vmem:[%s1101 + $0x8] sm:$0xff]
        %v1104 = vld [vmem:[%s1101 + $0x10] sm:$0xff]
        %v1105 = vld [vmem:[%s1101 + $0x18] sm:$0xff]
        %v1106 = vld [vmem:[%s1101 + $0x20] sm:$0xff]
        %v1107 = vld [vmem:[%s1101 + $0x28] sm:$0xff]
        %v1108 = vld [vmem:[%s1101 + $0x30] sm:$0xff]
        %v1109 = vld [vmem:[%s1101 + $0x38] sm:$0xff]
        %v1110 = vld [vmem:[%s1101 + $0x40] sm:$0xff]
        %v1111 = vld [vmem:[%s1101 + $0x48] sm:$0xff]
        %v1112 = vld [vmem:[%s1101 + $0x50] sm:$0xff]
        %v1113 = vld [vmem:[%s1101 + $0x58] sm:$0xff]
        %v1114 = vld [vmem:[%s1101 + $0x60] sm:$0xff]
        %v1115 = vld [vmem:[%s1101 + $0x68] sm:$0xff]
        %v1116 = vld [vmem:[%s1101 + $0x70] sm:$0xff]
        %v1117 = vld [vmem:[%s1101 + $0x78] sm:$0xff]
        %v1118 = vld [vmem:[%s1101 + $0x80] sm:$0xff]
        %v1119 = vld [vmem:[%s1101 + $0x88] sm:$0xff]
        %v1120 = vld [vmem:[%s1101 + $0x90] sm:$0xff]
        %v1121 = vld [vmem:[%s1101 + $0x98] sm:$0xff]
        %v1122 = vld [vmem:[%s1101 + $0xa0] sm:$0xff]
        %v1123 = vld [vmem:[%s1101 + $0xa8] sm:$0xff]
        %v1124 = vld [vmem:[%s1101 + $0xb0] sm:$0xff]
        %v1125 = vld [vmem:[%s1101 + $0xb8] sm:$0xff]
        %v1126 = vld [vmem:[%s1101 + $0xc0] sm:$0xff]
        %v1127 = vld [vmem:[%s1101 + $0xc8] sm:$0xff]
        %v1128 = vld [vmem:[%s1101 + $0xd0] sm:$0xff]
        %v1129 = vld [vmem:[%s1101 + $0xd8] sm:$0xff]
        %v1130 = vld [vmem:[%s1101 + $0xe0] sm:$0xff]
        %v1131 = vld [vmem:[%s1101 + $0xe8] sm:$0xff]
        %v1132 = vld [vmem:[%s1101 + $0xf0] sm:$0xff]
        %v1133 = vld [vmem:[%s1101 + $0xf8] sm:$0xff]
        %v1134 = vld [vmem:[%s2 + $0x7] sm:$0x1]
        %v1135 = vlaneseq
        %v1136 = vshrl.u32 %v1135, 7
        %v1137 = vsub.s32 0, %v1136
        %v1138 = vrot.slane %v1134, %v1137
        %1139 = vmatprep.subr.mxu0 0.0
        %1140 = vmatpush1.msra.mxu0 %v1102
        %1141 = vmatprep.subr.mxu0 0.0
        %1142 = vmatpush1.msra.mxu0 %v1103
        %1143 = vmatprep.subr.mxu0 0.0
        %1144 = vmatpush1.msra.mxu0 %v1104
        %1145 = vmatprep.subr.mxu0 0.0
        %1146 = vmatpush1.msra.mxu0 %v1105
        %1147 = vmatprep.subr.mxu0 0.0
        %1148 = vmatpush1.msra.mxu0 %v1106
        %1149 = vmatprep.subr.mxu0 0.0
        %1150 = vmatpush1.msra.mxu0 %v1107
        %1151 = vmatprep.subr.mxu0 0.0
        %1152 = vmatpush1.msra.mxu0 %v1108
        %1153 = vmatprep.subr.mxu0 0.0
        %1154 = vmatpush1.msra.mxu0 %v1109
        %1155 = vmatprep.subr.mxu0 0.0
        %1156 = vmatpush1.msra.mxu0 %v1110
        %1157 = vmatprep.subr.mxu0 0.0
        %1158 = vmatpush1.msra.mxu0 %v1111
        %1159 = vmatprep.subr.mxu0 0.0
        %1160 = vmatpush1.msra.mxu0 %v1112
        %1161 = vmatprep.subr.mxu0 0.0
        %1162 = vmatpush1.msra.mxu0 %v1113
        %1163 = vmatprep.subr.mxu0 0.0
        %1164 = vmatpush1.msra.mxu0 %v1114
        %1165 = vmatprep.subr.mxu0 0.0
        %1166 = vmatpush1.msra.mxu0 %v1115
        %1167 = vmatprep.subr.mxu0 0.0
        %1168 = vmatpush1.msra.mxu0 %v1116
        %1169 = vmatprep.subr.mxu0 0.0
        %1170 = vmatpush1.msra.mxu0 %v1117
        %1171 = vmatprep.subr.mxu0 0.0
        %1172 = vmatpush1.msra.mxu0 %v1118
        %1173 = vmatprep.subr.mxu0 0.0
        %1174 = vmatpush1.msra.mxu0 %v1119
        %1175 = vmatprep.subr.mxu0 0.0
        %1176 = vmatpush1.msra.mxu0 %v1120
        %1177 = vmatprep.subr.mxu0 0.0
        %1178 = vmatpush1.msra.mxu0 %v1121
        %1179 = vmatprep.subr.mxu0 0.0
        %1180 = vmatpush1.msra.mxu0 %v1122
        %1181 = vmatprep.subr.mxu0 0.0
        %1182 = vmatpush1.msra.mxu0 %v1123
        %1183 = vmatprep.subr.mxu0 0.0
        %1184 = vmatpush1.msra.mxu0 %v1124
        %1185 = vmatprep.subr.mxu0 0.0
        %1186 = vmatpush1.msra.mxu0 %v1125
        %1187 = vmatprep.subr.mxu0 0.0
        %1188 = vmatpush1.msra.mxu0 %v1126
        %1189 = vmatprep.subr.mxu0 0.0
        %1190 = vmatpush1.msra.mxu0 %v1127
        %1191 = vmatprep.subr.mxu0 0.0
        %1192 = vmatpush1.msra.mxu0 %v1128
        %1193 = vmatprep.subr.mxu0 0.0
        %1194 = vmatpush1.msra.mxu0 %v1129
        %1195 = vmatprep.subr.mxu0 0.0
        %1196 = vmatpush1.msra.mxu0 %v1130
        %1197 = vmatprep.subr.mxu0 0.0
        %1198 = vmatpush1.msra.mxu0 %v1131
        %1199 = vmatprep.subr.mxu0 0.0
        %1200 = vmatpush1.msra.mxu0 %v1132
        %1201 = vmatprep.subr.mxu0 0.0
        %1202 = vmatpush1.msra.mxu0 %v1133
        %1203 = vmatprep.mubr.f32.mxu0 %v325
        %1204 = vmatmul.mubr.f32.gmra.mrb[0].mxu0 %v324
        %v1205 = vpop.f32.mrb[0].mxu0
        %v1206 = vadd.f32 %v1138, %v1205
        %v1207 = vpop.f32.mrb[0].mxu0
        %1208 = vdwg.mxu0
        %v1209 = vmax.f32 %v1206, 0.0
        %1210 = vst [vmem:[#allocation2 + $0x68] sm:$0xff] %v1209
        %v1211 = vld [vmem:[%s4] sm:$0x3]
        %v1212 = vld [vmem:[#allocation2] sm:$0xff]
        %v1213 = vld [vmem:[#allocation2 + $0x8] sm:$0xff]
        %v1214 = vld [vmem:[#allocation2 + $0x10] sm:$0xff]
        %v1215 = vld [vmem:[#allocation2 + $0x18] sm:$0xff]
        %v1216 = vld [vmem:[#allocation2 + $0x20] sm:$0xff]
        %v1217 = vld [vmem:[#allocation2 + $0x28] sm:$0xff]
        %v1218 = vld [vmem:[#allocation2 + $0x30] sm:$0xff]
        %v1219 = vld [vmem:[#allocation2 + $0x38] sm:$0xff]
        %v1220 = vld [vmem:[#allocation2 + $0x40] sm:$0xff]
        %v1221 = vld [vmem:[#allocation2 + $0x48] sm:$0xff]
        %v1222 = vld [vmem:[#allocation2 + $0x50] sm:$0xff]
        %v1223 = vld [vmem:[#allocation2 + $0x58] sm:$0xff]
        %v1224 = vld [vmem:[#allocation2 + $0x60] sm:$0xff]
        %v1225 = vld [vmem:[#allocation2 + $0x68] sm:$0xff]
        %v1226 = vld [vmem:[#allocation7] sm:$0xff]
        %v1227 = vld [vmem:[#allocation7 + $0x8] sm:$0xff]
        %v1228 = vld [vmem:[#allocation7 + $0x10] sm:$0xff]
        %v1229 = vld [vmem:[#allocation7 + $0x18] sm:$0xff]
        %v1230 = vld [vmem:[#allocation7 + $0x20] sm:$0xff]
        %v1231 = vld [vmem:[#allocation7 + $0x28] sm:$0xff]
        %v1232 = vld [vmem:[#allocation7 + $0x30] sm:$0xff]
        %v1233 = vld [vmem:[#allocation7 + $0x38] sm:$0xff]
        %v1234 = vld [vmem:[#allocation7 + $0x40] sm:$0xff]
        %v1235 = vld [vmem:[#allocation7 + $0x48] sm:$0xff]
        %v1236 = vld [vmem:[#allocation7 + $0x50] sm:$0xff]
        %v1237 = vld [vmem:[#allocation7 + $0x58] sm:$0xff]
        %v1238 = vld [vmem:[#allocation7 + $0x60] sm:$0xff]
        %v1239 = vld [vmem:[#allocation7 + $0x68] sm:$0xff]
        %v1240 = vld [vmem:[#allocation7 + $0x70] sm:$0xff]
        %v1241 = vld [vmem:[#allocation7 + $0x78] sm:$0xff]
        %v1242 = vld [vmem:[#allocation7 + $0x80] sm:$0xff]
        %v1243 = vld [vmem:[#allocation7 + $0x88] sm:$0xff]
        %v1244 = vld [vmem:[#allocation7 + $0x90] sm:$0xff]
        %v1245 = vld [vmem:[#allocation7 + $0x98] sm:$0xff]
        %v1246 = vld [vmem:[#allocation7 + $0xa0] sm:$0xff]
        %v1247 = vld [vmem:[#allocation7 + $0xa8] sm:$0xff]
        %v1248 = vld [vmem:[#allocation7 + $0xb0] sm:$0xff]
        %v1249 = vld [vmem:[#allocation7 + $0xb8] sm:$0xff]
        %v1250 = vld [vmem:[#allocation7 + $0xc0] sm:$0xff]
        %v1251 = vld [vmem:[#allocation7 + $0xc8] sm:$0xff]
        %v1252 = vld [vmem:[#allocation7 + $0xd0] sm:$0xff]
        %v1253 = vld [vmem:[#allocation7 + $0xd8] sm:$0xff]
        %v1254 = vld [vmem:[#allocation7 + $0xe0] sm:$0xff]
        %v1255 = vld [vmem:[#allocation7 + $0xe8] sm:$0xff]
        %v1256 = vld [vmem:[#allocation7 + $0xf0] sm:$0xff]
        %v1257 = vld [vmem:[#allocation7 + $0xf8] sm:$0xff]
        %v1258 = vld [vmem:[#allocation7 + $0x100] sm:$0xff]
        %v1259 = vld [vmem:[#allocation7 + $0x108] sm:$0xff]
        %v1260 = vld [vmem:[#allocation7 + $0x110] sm:$0xff]
        %v1261 = vld [vmem:[#allocation7 + $0x118] sm:$0xff]
        %v1262 = vld [vmem:[#allocation7 + $0x120] sm:$0xff]
        %v1263 = vld [vmem:[#allocation7 + $0x128] sm:$0xff]
        %v1264 = vld [vmem:[#allocation7 + $0x130] sm:$0xff]
        %v1265 = vld [vmem:[#allocation7 + $0x138] sm:$0xff]
        %v1266 = vld [vmem:[#allocation7 + $0x140] sm:$0xff]
        %v1267 = vld [vmem:[#allocation7 + $0x148] sm:$0xff]
        %v1268 = vld [vmem:[#allocation7 + $0x150] sm:$0xff]
        %v1269 = vld [vmem:[#allocation7 + $0x158] sm:$0xff]
        %v1270 = vld [vmem:[#allocation7 + $0x160] sm:$0xff]
        %v1271 = vld [vmem:[#allocation7 + $0x168] sm:$0xff]
        %v1272 = vld [vmem:[#allocation7 + $0x170] sm:$0xff]
        %v1273 = vld [vmem:[#allocation7 + $0x178] sm:$0xff]
        %v1274 = vld [vmem:[#allocation7 + $0x180] sm:$0xff]
        %v1275 = vld [vmem:[#allocation7 + $0x188] sm:$0xff]
        %v1276 = vld [vmem:[#allocation7 + $0x190] sm:$0xff]
        %v1277 = vld [vmem:[#allocation7 + $0x198] sm:$0xff]
        %v1278 = vld [vmem:[#allocation7 + $0x1a0] sm:$0xff]
        %v1279 = vld [vmem:[#allocation7 + $0x1a8] sm:$0xff]
        %v1280 = vld [vmem:[#allocation7 + $0x1b0] sm:$0xff]
        %v1281 = vld [vmem:[#allocation7 + $0x1b8] sm:$0xff]
        %v1282 = vld [vmem:[#allocation7 + $0x1c0] sm:$0xff]
        %v1283 = vld [vmem:[#allocation7 + $0x1c8] sm:$0xff]
        %v1284 = vld [vmem:[#allocation7 + $0x1d0] sm:$0xff]
        %v1285 = vld [vmem:[#allocation7 + $0x1d8] sm:$0xff]
        %v1286 = vld [vmem:[#allocation7 + $0x1e0] sm:$0xff]
        %v1287 = vld [vmem:[#allocation7 + $0x1e8] sm:$0xff]
        %v1288 = vld [vmem:[#allocation7 + $0x1f0] sm:$0xff]
        %v1289 = vld [vmem:[#allocation7 + $0x1f8] sm:$0xff]
        %v1291 = vlaneseq
        %v1292 = vshrl.u32 %v1291, 7
        %v1293 = vsub.s32 0, %v1292
        %v1294 = vrot.slane %v1211, %v1293
        %v1295 = vlaneseq
        %v1296 = vshrl.u32 %v1295, 7
        %v1297 = vsub.s32 1, %v1296
        %v1298 = vrot.slane %v1211, %v1297
        %1301 = vmatprep.subr.mxu0 %v1227
        %1302 = vmatpush1.msra.mxu0 %v1226
        %1303 = vmatprep.subr.mxu0 %v1229
        %1304 = vmatpush1.msra.mxu0 %v1228
        %1305 = vmatprep.subr.mxu0 %v1231
        %1306 = vmatpush1.msra.mxu0 %v1230
        %1307 = vmatprep.subr.mxu0 %v1233
        %1308 = vmatpush1.msra.mxu0 %v1232
        %1309 = vmatprep.subr.mxu0 %v1235
        %1310 = vmatpush1.msra.mxu0 %v1234
        %1311 = vmatprep.subr.mxu0 %v1237
        %1312 = vmatpush1.msra.mxu0 %v1236
        %1313 = vmatprep.subr.mxu0 %v1239
        %1314 = vmatpush1.msra.mxu0 %v1238
        %1315 = vmatprep.subr.mxu0 %v1241
        %1316 = vmatpush1.msra.mxu0 %v1240
        %1317 = vmatprep.subr.mxu0 %v1243
        %1318 = vmatpush1.msra.mxu0 %v1242
        %1319 = vmatprep.subr.mxu0 %v1245
        %1320 = vmatpush1.msra.mxu0 %v1244
        %1321 = vmatprep.subr.mxu0 %v1247
        %1322 = vmatpush1.msra.mxu0 %v1246
        %1323 = vmatprep.subr.mxu0 %v1249
        %1324 = vmatpush1.msra.mxu0 %v1248
        %1325 = vmatprep.subr.mxu0 %v1251
        %1326 = vmatpush1.msra.mxu0 %v1250
        %1327 = vmatprep.subr.mxu0 %v1253
        %1328 = vmatpush1.msra.mxu0 %v1252
        %1329 = vmatprep.subr.mxu0 %v1255
        %1330 = vmatpush1.msra.mxu0 %v1254
        %1331 = vmatprep.subr.mxu0 %v1257
        %1332 = vmatpush1.msra.mxu0 %v1256
        %1333 = vmatprep.subr.mxu0 %v1259
        %1334 = vmatpush1.msra.mxu0 %v1258
        %1335 = vmatprep.subr.mxu0 %v1261
        %1336 = vmatpush1.msra.mxu0 %v1260
        %1337 = vmatprep.subr.mxu0 %v1263
        %1338 = vmatpush1.msra.mxu0 %v1262
        %1339 = vmatprep.subr.mxu0 %v1265
        %1340 = vmatpush1.msra.mxu0 %v1264
        %1341 = vmatprep.subr.mxu0 %v1267
        %1342 = vmatpush1.msra.mxu0 %v1266
        %1343 = vmatprep.subr.mxu0 %v1269
        %1344 = vmatpush1.msra.mxu0 %v1268
        %1345 = vmatprep.subr.mxu0 %v1271
        %1346 = vmatpush1.msra.mxu0 %v1270
        %1347 = vmatprep.subr.mxu0 %v1273
        %1348 = vmatpush1.msra.mxu0 %v1272
        %1349 = vmatprep.subr.mxu0 %v1275
        %1350 = vmatpush1.msra.mxu0 %v1274
        %1351 = vmatprep.subr.mxu0 %v1277
        %1352 = vmatpush1.msra.mxu0 %v1276
        %1353 = vmatprep.subr.mxu0 %v1279
        %1354 = vmatpush1.msra.mxu0 %v1278
        %1355 = vmatprep.subr.mxu0 %v1281
        %1356 = vmatpush1.msra.mxu0 %v1280
        %1357 = vmatprep.subr.mxu0 %v1283
        %1358 = vmatpush1.msra.mxu0 %v1282
        %1359 = vmatprep.subr.mxu0 %v1285
        %1360 = vmatpush1.msra.mxu0 %v1284
        %1361 = vmatprep.subr.mxu0 %v1287
        %1362 = vmatpush1.msra.mxu0 %v1286
        %1363 = vmatprep.subr.mxu0 %v1289
        %1364 = vmatpush1.msra.mxu0 %v1288
        %1365 = vmatprep.mubr.f32.mxu0 %v1213
        %1366 = vmatmul.mubr.f32.gmra.mrb[0].mxu0 %v1212
        %v1367 = vpop.f32.mrb[0].mxu0
        %v1368 = vadd.f32 %v1294, %v1367
        %v1369 = vpop.f32.mrb[0].mxu0
        %v1370 = vadd.f32 %v1298, %v1369
        %1371 = vmatprep.mubr.f32.mxu0 %v1215
        %1372 = vmatmul.mubr.f32.gmra.mrb[0].mxu0 %v1214
        %v1373 = vpop.f32.mrb[0].mxu0
        %v1374 = vadd.f32 %v1294, %v1373
        %v1375 = vpop.f32.mrb[0].mxu0
        %v1376 = vadd.f32 %v1298, %v1375
        %1377 = vmatprep.mubr.f32.mxu0 %v1217
        %1378 = vmatmul.mubr.f32.gmra.mrb[0].mxu0 %v1216
        %v1379 = vpop.f32.mrb[0].mxu0
        %v1380 = vadd.f32 %v1294, %v1379
        %v1381 = vpop.f32.mrb[0].mxu0
        %v1382 = vadd.f32 %v1298, %v1381
        %1383 = vmatprep.mubr.f32.mxu0 %v1219
        %1384 = vmatmul.mubr.f32.gmra.mrb[0].mxu0 %v1218
        %v1385 = vpop.f32.mrb[0].mxu0
        %v1386 = vadd.f32 %v1294, %v1385
        %v1387 = vpop.f32.mrb[0].mxu0
        %v1388 = vadd.f32 %v1298, %v1387
        %1389 = vmatprep.mubr.f32.mxu0 %v1221
        %1390 = vmatmul.mubr.f32.gmra.mrb[0].mxu0 %v1220
        %v1391 = vpop.f32.mrb[0].mxu0
        %v1392 = vadd.f32 %v1294, %v1391
        %v1393 = vpop.f32.mrb[0].mxu0
        %v1394 = vadd.f32 %v1298, %v1393
        %1395 = vmatprep.mubr.f32.mxu0 %v1223
        %1396 = vmatmul.mubr.f32.gmra.mrb[0].mxu0 %v1222
        %v1397 = vpop.f32.mrb[0].mxu0
        %v1398 = vadd.f32 %v1294, %v1397
        %v1399 = vpop.f32.mrb[0].mxu0
        %v1400 = vadd.f32 %v1298, %v1399
        %1401 = vmatprep.mubr.f32.mxu0 %v1225
        %1402 = vmatmul.mubr.f32.gmra.mrb[0].mxu0 %v1224
        %v1403 = vpop.f32.mrb[0].mxu0
        %v1404 = vadd.f32 %v1294, %v1403
        %v1405 = vpop.f32.mrb[0].mxu0
        %v1406 = vadd.f32 %v1298, %v1405
        %1407 = vdwg.mxu0
        %v1408 = vmax.f32 %v1368, 0.0
        %v1409 = vmax.f32 %v1370, 0.0
        %v1410 = vmax.f32 %v1374, 0.0
        %v1411 = vmax.f32 %v1376, 0.0
        %v1412 = vmax.f32 %v1380, 0.0
        %v1413 = vmax.f32 %v1382, 0.0
        %v1414 = vmax.f32 %v1386, 0.0
        %v1415 = vmax.f32 %v1388, 0.0
        %v1416 = vmax.f32 %v1392, 0.0
        %v1417 = vmax.f32 %v1394, 0.0
        %v1418 = vmax.f32 %v1398, 0.0
        %v1419 = vmax.f32 %v1400, 0.0
        %v1420 = vmax.f32 %v1404, 0.0
        %v1421 = vmax.f32 %v1406, 0.0
        %s1422 = scalar_lea.vmem [#allocation7], 512
        %v1423 = vld [vmem:[%s1422] sm:$0xff]
        %v1424 = vld [vmem:[%s1422 + $0x8] sm:$0xff]
        %v1425 = vld [vmem:[%s1422 + $0x10] sm:$0xff]
        %v1426 = vld [vmem:[%s1422 + $0x18] sm:$0xff]
        %v1427 = vld [vmem:[%s1422 + $0x20] sm:$0xff]
        %v1428 = vld [vmem:[%s1422 + $0x28] sm:$0xff]
        %v1429 = vld [vmem:[%s1422 + $0x30] sm:$0xff]
        %v1430 = vld [vmem:[%s1422 + $0x38] sm:$0xff]
        %v1431 = vld [vmem:[%s1422 + $0x40] sm:$0xff]
        %v1432 = vld [vmem:[%s1422 + $0x48] sm:$0xff]
        %v1433 = vld [vmem:[%s1422 + $0x50] sm:$0xff]
        %v1434 = vld [vmem:[%s1422 + $0x58] sm:$0xff]
        %v1435 = vld [vmem:[%s1422 + $0x60] sm:$0xff]
        %v1436 = vld [vmem:[%s1422 + $0x68] sm:$0xff]
        %v1437 = vld [vmem:[%s1422 + $0x70] sm:$0xff]
        %v1438 = vld [vmem:[%s1422 + $0x78] sm:$0xff]
        %v1439 = vld [vmem:[%s1422 + $0x80] sm:$0xff]
        %v1440 = vld [vmem:[%s1422 + $0x88] sm:$0xff]
        %v1441 = vld [vmem:[%s1422 + $0x90] sm:$0xff]
        %v1442 = vld [vmem:[%s1422 + $0x98] sm:$0xff]
        %v1443 = vld [vmem:[%s1422 + $0xa0] sm:$0xff]
        %v1444 = vld [vmem:[%s1422 + $0xa8] sm:$0xff]
        %v1445 = vld [vmem:[%s1422 + $0xb0] sm:$0xff]
        %v1446 = vld [vmem:[%s1422 + $0xb8] sm:$0xff]
        %v1447 = vld [vmem:[%s1422 + $0xc0] sm:$0xff]
        %v1448 = vld [vmem:[%s1422 + $0xc8] sm:$0xff]
        %v1449 = vld [vmem:[%s1422 + $0xd0] sm:$0xff]
        %v1450 = vld [vmem:[%s1422 + $0xd8] sm:$0xff]
        %v1451 = vld [vmem:[%s1422 + $0xe0] sm:$0xff]
        %v1452 = vld [vmem:[%s1422 + $0xe8] sm:$0xff]
        %v1453 = vld [vmem:[%s1422 + $0xf0] sm:$0xff]
        %v1454 = vld [vmem:[%s1422 + $0xf8] sm:$0xff]
        %v1455 = vld [vmem:[%s1422 + $0x100] sm:$0xff]
        %v1456 = vld [vmem:[%s1422 + $0x108] sm:$0xff]
        %v1457 = vld [vmem:[%s1422 + $0x110] sm:$0xff]
        %v1458 = vld [vmem:[%s1422 + $0x118] sm:$0xff]
        %v1459 = vld [vmem:[%s1422 + $0x120] sm:$0xff]
        %v1460 = vld [vmem:[%s1422 + $0x128] sm:$0xff]
        %v1461 = vld [vmem:[%s1422 + $0x130] sm:$0xff]
        %v1462 = vld [vmem:[%s1422 + $0x138] sm:$0xff]
        %v1463 = vld [vmem:[%s1422 + $0x140] sm:$0xff]
        %v1464 = vld [vmem:[%s1422 + $0x148] sm:$0xff]
        %v1465 = vld [vmem:[%s1422 + $0x150] sm:$0xff]
        %v1466 = vld [vmem:[%s1422 + $0x158] sm:$0xff]
        %v1467 = vld [vmem:[%s1422 + $0x160] sm:$0xff]
        %v1468 = vld [vmem:[%s1422 + $0x168] sm:$0xff]
        %v1469 = vld [vmem:[%s1422 + $0x170] sm:$0xff]
        %v1470 = vld [vmem:[%s1422 + $0x178] sm:$0xff]
        %v1471 = vld [vmem:[%s1422 + $0x180] sm:$0xff]
        %v1472 = vld [vmem:[%s1422 + $0x188] sm:$0xff]
        %v1473 = vld [vmem:[%s1422 + $0x190] sm:$0xff]
        %v1474 = vld [vmem:[%s1422 + $0x198] sm:$0xff]
        %v1475 = vld [vmem:[%s1422 + $0x1a0] sm:$0xff]
        %v1476 = vld [vmem:[%s1422 + $0x1a8] sm:$0xff]
        %v1477 = vld [vmem:[%s1422 + $0x1b0] sm:$0xff]
        %v1478 = vld [vmem:[%s1422 + $0x1b8] sm:$0xff]
        %v1479 = vld [vmem:[%s1422 + $0x1c0] sm:$0xff]
        %v1480 = vld [vmem:[%s1422 + $0x1c8] sm:$0xff]
        %v1481 = vld [vmem:[%s1422 + $0x1d0] sm:$0xff]
        %v1482 = vld [vmem:[%s1422 + $0x1d8] sm:$0xff]
        %v1483 = vld [vmem:[%s1422 + $0x1e0] sm:$0xff]
        %v1484 = vld [vmem:[%s1422 + $0x1e8] sm:$0xff]
        %v1485 = vld [vmem:[%s1422 + $0x1f0] sm:$0xff]
        %v1486 = vld [vmem:[%s1422 + $0x1f8] sm:$0xff]
        %1487 = vmatprep.subr.mxu0 %v1424
        %1488 = vmatpush1.msra.mxu0 %v1423
        %1489 = vmatprep.subr.mxu0 %v1426
        %1490 = vmatpush1.msra.mxu0 %v1425
        %1491 = vmatprep.subr.mxu0 %v1428
        %1492 = vmatpush1.msra.mxu0 %v1427
        %1493 = vmatprep.subr.mxu0 %v1430
        %1494 = vmatpush1.msra.mxu0 %v1429
        %1495 = vmatprep.subr.mxu0 %v1432
        %1496 = vmatpush1.msra.mxu0 %v1431
        %1497 = vmatprep.subr.mxu0 %v1434
        %1498 = vmatpush1.msra.mxu0 %v1433
        %1499 = vmatprep.subr.mxu0 %v1436
        %1500 = vmatpush1.msra.mxu0 %v1435
        %1501 = vmatprep.subr.mxu0 %v1438
        %1502 = vmatpush1.msra.mxu0 %v1437
        %1503 = vmatprep.subr.mxu0 %v1440
        %1504 = vmatpush1.msra.mxu0 %v1439
        %1505 = vmatprep.subr.mxu0 %v1442
        %1506 = vmatpush1.msra.mxu0 %v1441
        %1507 = vmatprep.subr.mxu0 %v1444
        %1508 = vmatpush1.msra.mxu0 %v1443
        %1509 = vmatprep.subr.mxu0 %v1446
        %1510 = vmatpush1.msra.mxu0 %v1445
        %1511 = vmatprep.subr.mxu0 %v1448
        %1512 = vmatpush1.msra.mxu0 %v1447
        %1513 = vmatprep.subr.mxu0 %v1450
        %1514 = vmatpush1.msra.mxu0 %v1449
        %1515 = vmatprep.subr.mxu0 %v1452
        %1516 = vmatpush1.msra.mxu0 %v1451
        %1517 = vmatprep.subr.mxu0 %v1454
        %1518 = vmatpush1.msra.mxu0 %v1453
        %1519 = vmatprep.subr.mxu0 %v1456
        %1520 = vmatpush1.msra.mxu0 %v1455
        %1521 = vmatprep.subr.mxu0 %v1458
        %1522 = vmatpush1.msra.mxu0 %v1457
        %1523 = vmatprep.subr.mxu0 %v1460
        %1524 = vmatpush1.msra.mxu0 %v1459
        %1525 = vmatprep.subr.mxu0 %v1462
        %1526 = vmatpush1.msra.mxu0 %v1461
        %1527 = vmatprep.subr.mxu0 %v1464
        %1528 = vmatpush1.msra.mxu0 %v1463
        %1529 = vmatprep.subr.mxu0 %v1466
        %1530 = vmatpush1.msra.mxu0 %v1465
        %1531 = vmatprep.subr.mxu0 %v1468
        %1532 = vmatpush1.msra.mxu0 %v1467
        %1533 = vmatprep.subr.mxu0 %v1470
        %1534 = vmatpush1.msra.mxu0 %v1469
        %1535 = vmatprep.subr.mxu0 %v1472
        %1536 = vmatpush1.msra.mxu0 %v1471
        %1537 = vmatprep.subr.mxu0 %v1474
        %1538 = vmatpush1.msra.mxu0 %v1473
        %1539 = vmatprep.subr.mxu0 %v1476
        %1540 = vmatpush1.msra.mxu0 %v1475
        %1541 = vmatprep.subr.mxu0 %v1478
        %1542 = vmatpush1.msra.mxu0 %v1477
        %1543 = vmatprep.subr.mxu0 %v1480
        %1544 = vmatpush1.msra.mxu0 %v1479
        %1545 = vmatprep.subr.mxu0 %v1482
        %1546 = vmatpush1.msra.mxu0 %v1481
        %1547 = vmatprep.subr.mxu0 %v1484
        %1548 = vmatpush1.msra.mxu0 %v1483
        %1549 = vmatprep.subr.mxu0 %v1486
        %1550 = vmatpush1.msra.mxu0 %v1485
        %1551 = vmatprep.mubr.f32.mxu0 %v1213
        %1552 = vmatmul.mubr.f32.gmra.mrb[0].mxu0 %v1212
        %v1553 = vpop.f32.mrb[0].mxu0
        %v1554 = vadd.f32 %v1294, %v1553
        %v1555 = vpop.f32.mrb[0].mxu0
        %v1556 = vadd.f32 %v1298, %v1555
        %1557 = vmatprep.mubr.f32.mxu0 %v1215
        %1558 = vmatmul.mubr.f32.gmra.mrb[0].mxu0 %v1214
        %v1559 = vpop.f32.mrb[0].mxu0
        %v1560 = vadd.f32 %v1294, %v1559
        %v1561 = vpop.f32.mrb[0].mxu0
        %v1562 = vadd.f32 %v1298, %v1561
        %1563 = vmatprep.mubr.f32.mxu0 %v1217
        %1564 = vmatmul.mubr.f32.gmra.mrb[0].mxu0 %v1216
        %v1565 = vpop.f32.mrb[0].mxu0
        %v1566 = vadd.f32 %v1294, %v1565
        %v1567 = vpop.f32.mrb[0].mxu0
        %v1568 = vadd.f32 %v1298, %v1567
        %1569 = vmatprep.mubr.f32.mxu0 %v1219
        %1570 = vmatmul.mubr.f32.gmra.mrb[0].mxu0 %v1218
        %v1571 = vpop.f32.mrb[0].mxu0
        %v1572 = vadd.f32 %v1294, %v1571
        %v1573 = vpop.f32.mrb[0].mxu0
        %v1574 = vadd.f32 %v1298, %v1573
        %1575 = vmatprep.mubr.f32.mxu0 %v1221
        %1576 = vmatmul.mubr.f32.gmra.mrb[0].mxu0 %v1220
        %v1577 = vpop.f32.mrb[0].mxu0
        %v1578 = vadd.f32 %v1294, %v1577
        %v1579 = vpop.f32.mrb[0].mxu0
        %v1580 = vadd.f32 %v1298, %v1579
        %1581 = vmatprep.mubr.f32.mxu0 %v1223
        %1582 = vmatmul.mubr.f32.gmra.mrb[0].mxu0 %v1222
        %v1583 = vpop.f32.mrb[0].mxu0
        %v1584 = vadd.f32 %v1294, %v1583
        %v1585 = vpop.f32.mrb[0].mxu0
        %v1586 = vadd.f32 %v1298, %v1585
        %1587 = vmatprep.mubr.f32.mxu0 %v1225
        %1588 = vmatmul.mubr.f32.gmra.mrb[0].mxu0 %v1224
        %v1589 = vpop.f32.mrb[0].mxu0
        %v1590 = vadd.f32 %v1294, %v1589
        %v1591 = vpop.f32.mrb[0].mxu0
        %v1592 = vadd.f32 %v1298, %v1591
        %1593 = vdwg.mxu0
        %v1594 = vmax.f32 %v1554, 0.0
        %v1595 = vmax.f32 %v1556, 0.0
        %v1596 = vmax.f32 %v1560, 0.0
        %v1597 = vmax.f32 %v1562, 0.0
        %v1598 = vmax.f32 %v1566, 0.0
        %v1599 = vmax.f32 %v1568, 0.0
        %v1600 = vmax.f32 %v1572, 0.0
        %v1601 = vmax.f32 %v1574, 0.0
        %v1602 = vmax.f32 %v1578, 0.0
        %v1603 = vmax.f32 %v1580, 0.0
        %v1604 = vmax.f32 %v1584, 0.0
        %v1605 = vmax.f32 %v1586, 0.0
        %v1606 = vmax.f32 %v1590, 0.0
        %v1607 = vmax.f32 %v1592, 0.0
        %1608 = vst [vmem:[#allocation3 + $0x10] sm:$0xff] %v1408
        %1609 = vst [vmem:[#allocation3 + $0x18] sm:$0xff] %v1409
        %1610 = vst [vmem:[#allocation3 + $0x50] sm:$0xff] %v1410
        %1611 = vst [vmem:[#allocation3 + $0x58] sm:$0xff] %v1411
        %1612 = vst [vmem:[#allocation3 + $0x90] sm:$0xff] %v1412
        %1613 = vst [vmem:[#allocation3 + $0x98] sm:$0xff] %v1413
        %1614 = vst [vmem:[#allocation3 + $0xd0] sm:$0xff] %v1414
        %1615 = vst [vmem:[#allocation3 + $0xd8] sm:$0xff] %v1415
        %1616 = vst [vmem:[#allocation3 + $0x110] sm:$0xff] %v1416
        %1617 = vst [vmem:[#allocation3 + $0x118] sm:$0xff] %v1417
        %1618 = vst [vmem:[#allocation3 + $0x150] sm:$0xff] %v1418
        %1619 = vst [vmem:[#allocation3 + $0x158] sm:$0xff] %v1419
        %1620 = vst [vmem:[#allocation3 + $0x190] sm:$0xff] %v1420
        %1621 = vst [vmem:[#allocation3 + $0x198] sm:$0xff] %v1421
        %1622 = vst [vmem:[#allocation3 + $0x20] sm:$0xff] %v1594
        %1623 = vst [vmem:[#allocation3 + $0x28] sm:$0xff] %v1595
        %1624 = vst [vmem:[#allocation3 + $0x60] sm:$0xff] %v1596
        %1625 = vst [vmem:[#allocation3 + $0x68] sm:$0xff] %v1597
        %1626 = vst [vmem:[#allocation3 + $0xa0] sm:$0xff] %v1598
        %1627 = vst [vmem:[#allocation3 + $0xa8] sm:$0xff] %v1599
        %1628 = vst [vmem:[#allocation3 + $0xe0] sm:$0xff] %v1600
        %1629 = vst [vmem:[#allocation3 + $0xe8] sm:$0xff] %v1601
        %1630 = vst [vmem:[#allocation3 + $0x120] sm:$0xff] %v1602
        %1631 = vst [vmem:[#allocation3 + $0x128] sm:$0xff] %v1603
        %1632 = vst [vmem:[#allocation3 + $0x160] sm:$0xff] %v1604
        %1633 = vst [vmem:[#allocation3 + $0x168] sm:$0xff] %v1605
        %1634 = vst [vmem:[#allocation3 + $0x1a0] sm:$0xff] %v1606
        %1635 = vst [vmem:[#allocation3 + $0x1a8] sm:$0xff] %v1607
        %1636 = vst [vmem:[#allocation3] sm:$0xff] 0.0
        %1637 = vst [vmem:[#allocation3 + $0x8] sm:$0xff] 0.0
        %1638 = vst [vmem:[#allocation3 + $0x40] sm:$0xff] %v1594
        %1639 = vst [vmem:[#allocation3 + $0x48] sm:$0xff] %v1595
        %1640 = vst [vmem:[#allocation3 + $0x80] sm:$0xff] %v1596
        %1641 = vst [vmem:[#allocation3 + $0x88] sm:$0xff] %v1597
        %1642 = vst [vmem:[#allocation3 + $0xc0] sm:$0xff] %v1598
        %1643 = vst [vmem:[#allocation3 + $0xc8] sm:$0xff] %v1599
        %1644 = vst [vmem:[#allocation3 + $0x100] sm:$0xff] %v1600
        %1645 = vst [vmem:[#allocation3 + $0x108] sm:$0xff] %v1601
        %1646 = vst [vmem:[#allocation3 + $0x140] sm:$0xff] %v1602
        %1647 = vst [vmem:[#allocation3 + $0x148] sm:$0xff] %v1603
        %1648 = vst [vmem:[#allocation3 + $0x180] sm:$0xff] %v1604
        %1649 = vst [vmem:[#allocation3 + $0x188] sm:$0xff] %v1605
        %1650 = vst [vmem:[#allocation3 + $0x30] sm:$0xff] %v1410
        %1651 = vst [vmem:[#allocation3 + $0x38] sm:$0xff] %v1411
        %1652 = vst [vmem:[#allocation3 + $0x70] sm:$0xff] %v1412
        %1653 = vst [vmem:[#allocation3 + $0x78] sm:$0xff] %v1413
        %1654 = vst [vmem:[#allocation3 + $0xb0] sm:$0xff] %v1414
        %1655 = vst [vmem:[#allocation3 + $0xb8] sm:$0xff] %v1415
        %1656 = vst [vmem:[#allocation3 + $0xf0] sm:$0xff] %v1416
        %1657 = vst [vmem:[#allocation3 + $0xf8] sm:$0xff] %v1417
        %1658 = vst [vmem:[#allocation3 + $0x130] sm:$0xff] %v1418
        %1659 = vst [vmem:[#allocation3 + $0x138] sm:$0xff] %v1419
        %1660 = vst [vmem:[#allocation3 + $0x170] sm:$0xff] %v1420
        %1661 = vst [vmem:[#allocation3 + $0x178] sm:$0xff] %v1421
        %1662 = vst [vmem:[#allocation3 + $0x1b0] sm:$0xff] 0.0
        %1663 = vst [vmem:[#allocation3 + $0x1b8] sm:$0xff] 0.0
        %v1664 = vld [vmem:[#allocation3] sm:$0xff]
        %v1665 = vld [vmem:[#allocation3 + $0x8] sm:$0xff]
        %v1666 = vld [vmem:[#allocation3 + $0x10] sm:$0xff]
        %v1667 = vld [vmem:[#allocation3 + $0x18] sm:$0xff]
        %v1668 = vld [vmem:[#allocation3 + $0x20] sm:$0xff]
        %v1669 = vld [vmem:[#allocation3 + $0x28] sm:$0xff]
        %v1670 = vld [vmem:[#allocation3 + $0x30] sm:$0xff]
        %v1671 = vld [vmem:[#allocation3 + $0x38] sm:$0xff]
        %v1672 = vld [vmem:[#allocation3 + $0x40] sm:$0xff]
        %v1673 = vld [vmem:[#allocation3 + $0x48] sm:$0xff]
        %v1674 = vld [vmem:[#allocation3 + $0x50] sm:$0xff]
        %v1675 = vld [vmem:[#allocation3 + $0x58] sm:$0xff]
        %v1676 = vld [vmem:[#allocation3 + $0x60] sm:$0xff]
        %v1677 = vld [vmem:[#allocation3 + $0x68] sm:$0xff]
        %v1678 = vld [vmem:[#allocation3 + $0x70] sm:$0xff]
        %v1679 = vld [vmem:[#allocation3 + $0x78] sm:$0xff]
        %v1680 = vld [vmem:[#allocation3 + $0x80] sm:$0xff]
        %v1681 = vld [vmem:[#allocation3 + $0x88] sm:$0xff]
        %v1682 = vld [vmem:[#allocation3 + $0x90] sm:$0xff]
        %v1683 = vld [vmem:[#allocation3 + $0x98] sm:$0xff]
        %v1684 = vld [vmem:[#allocation3 + $0xa0] sm:$0xff]
        %v1685 = vld [vmem:[#allocation3 + $0xa8] sm:$0xff]
        %v1686 = vld [vmem:[#allocation3 + $0xb0] sm:$0xff]
        %v1687 = vld [vmem:[#allocation3 + $0xb8] sm:$0xff]
        %v1688 = vld [vmem:[#allocation3 + $0xc0] sm:$0xff]
        %v1689 = vld [vmem:[#allocation3 + $0xc8] sm:$0xff]
        %v1690 = vld [vmem:[#allocation3 + $0xd0] sm:$0xff]
        %v1691 = vld [vmem:[#allocation3 + $0xd8] sm:$0xff]
        %v1692 = vld [vmem:[#allocation3 + $0xe0] sm:$0xff]
        %v1693 = vld [vmem:[#allocation3 + $0xe8] sm:$0xff]
        %v1694 = vld [vmem:[#allocation3 + $0xf0] sm:$0xff]
        %v1695 = vld [vmem:[#allocation3 + $0xf8] sm:$0xff]
        %v1696 = vld [vmem:[#allocation3 + $0x100] sm:$0xff]
        %v1697 = vld [vmem:[#allocation3 + $0x108] sm:$0xff]
        %v1698 = vld [vmem:[#allocation3 + $0x110] sm:$0xff]
        %v1699 = vld [vmem:[#allocation3 + $0x118] sm:$0xff]
        %v1700 = vld [vmem:[#allocation3 + $0x120] sm:$0xff]
        %v1701 = vld [vmem:[#allocation3 + $0x128] sm:$0xff]
        %v1702 = vld [vmem:[#allocation3 + $0x130] sm:$0xff]
        %v1703 = vld [vmem:[#allocation3 + $0x138] sm:$0xff]
        %v1704 = vld [vmem:[#allocation3 + $0x140] sm:$0xff]
        %v1705 = vld [vmem:[#allocation3 + $0x148] sm:$0xff]
        %v1706 = vld [vmem:[#allocation3 + $0x150] sm:$0xff]
        %v1707 = vld [vmem:[#allocation3 + $0x158] sm:$0xff]
        %v1708 = vld [vmem:[#allocation3 + $0x160] sm:$0xff]
        %v1709 = vld [vmem:[#allocation3 + $0x168] sm:$0xff]
        %v1710 = vld [vmem:[#allocation3 + $0x170] sm:$0xff]
        %v1711 = vld [vmem:[#allocation3 + $0x178] sm:$0xff]
        %v1712 = vld [vmem:[#allocation3 + $0x180] sm:$0xff]
        %v1713 = vld [vmem:[#allocation3 + $0x188] sm:$0xff]
        %v1714 = vld [vmem:[#allocation3 + $0x190] sm:$0xff]
        %v1715 = vld [vmem:[#allocation3 + $0x198] sm:$0xff]
        %v1716 = vld [vmem:[#allocation3 + $0x1a0] sm:$0xff]
        %v1717 = vld [vmem:[#allocation3 + $0x1a8] sm:$0xff]
        %v1718 = vld [vmem:[#allocation3 + $0x1b0] sm:$0xff]
        %v1719 = vld [vmem:[#allocation3 + $0x1b8] sm:$0xff]
        %v1720 = vld [vmem:[#allocation9] sm:$0xff]
        %v1721 = vld [vmem:[#allocation9 + $0x8] sm:$0xff]
        %v1722 = vld [vmem:[#allocation9 + $0x10] sm:$0xff]
        %v1723 = vld [vmem:[#allocation9 + $0x18] sm:$0xff]
        %v1724 = vld [vmem:[#allocation9 + $0x20] sm:$0xff]
        %v1725 = vld [vmem:[#allocation9 + $0x28] sm:$0xff]
        %v1726 = vld [vmem:[#allocation9 + $0x30] sm:$0xff]
        %v1727 = vld [vmem:[#allocation9 + $0x38] sm:$0xff]
        %v1728 = vld [vmem:[#allocation9 + $0x40] sm:$0xff]
        %v1729 = vld [vmem:[#allocation9 + $0x48] sm:$0xff]
        %v1730 = vld [vmem:[#allocation9 + $0x50] sm:$0xff]
        %v1731 = vld [vmem:[#allocation9 + $0x58] sm:$0xff]
        %v1732 = vld [vmem:[#allocation9 + $0x60] sm:$0xff]
        %v1733 = vld [vmem:[#allocation9 + $0x68] sm:$0xff]
        %v1734 = vld [vmem:[#allocation9 + $0x70] sm:$0xff]
        %v1735 = vld [vmem:[#allocation9 + $0x78] sm:$0xff]
        %v1736 = vld [vmem:[#allocation9 + $0x80] sm:$0xff]
        %v1737 = vld [vmem:[#allocation9 + $0x88] sm:$0xff]
        %v1738 = vld [vmem:[#allocation9 + $0x90] sm:$0xff]
        %v1739 = vld [vmem:[#allocation9 + $0x98] sm:$0xff]
        %v1740 = vld [vmem:[#allocation9 + $0xa0] sm:$0xff]
        %v1741 = vld [vmem:[#allocation9 + $0xa8] sm:$0xff]
        %v1742 = vld [vmem:[#allocation9 + $0xb0] sm:$0xff]
        %v1743 = vld [vmem:[#allocation9 + $0xb8] sm:$0xff]
        %v1744 = vld [vmem:[#allocation9 + $0xc0] sm:$0xff]
        %v1745 = vld [vmem:[#allocation9 + $0xc8] sm:$0xff]
        %v1746 = vld [vmem:[#allocation9 + $0xd0] sm:$0xff]
        %v1747 = vld [vmem:[#allocation9 + $0xd8] sm:$0xff]
        %v1748 = vld [vmem:[#allocation9 + $0xe0] sm:$0xff]
        %v1749 = vld [vmem:[#allocation9 + $0xe8] sm:$0xff]
        %v1750 = vld [vmem:[#allocation9 + $0xf0] sm:$0xff]
        %v1751 = vld [vmem:[#allocation9 + $0xf8] sm:$0xff]
        %v1752 = vld [vmem:[#allocation9 + $0x100] sm:$0xff]
        %v1753 = vld [vmem:[#allocation9 + $0x108] sm:$0xff]
        %v1754 = vld [vmem:[#allocation9 + $0x110] sm:$0xff]
        %v1755 = vld [vmem:[#allocation9 + $0x118] sm:$0xff]
        %v1756 = vld [vmem:[#allocation9 + $0x120] sm:$0xff]
        %v1757 = vld [vmem:[#allocation9 + $0x128] sm:$0xff]
        %v1758 = vld [vmem:[#allocation9 + $0x130] sm:$0xff]
        %v1759 = vld [vmem:[#allocation9 + $0x138] sm:$0xff]
        %v1760 = vld [vmem:[#allocation9 + $0x140] sm:$0xff]
        %v1761 = vld [vmem:[#allocation9 + $0x148] sm:$0xff]
        %v1762 = vld [vmem:[#allocation9 + $0x150] sm:$0xff]
        %v1763 = vld [vmem:[#allocation9 + $0x158] sm:$0xff]
        %v1764 = vld [vmem:[#allocation9 + $0x160] sm:$0xff]
        %v1765 = vld [vmem:[#allocation9 + $0x168] sm:$0xff]
        %v1766 = vld [vmem:[#allocation9 + $0x170] sm:$0xff]
        %v1767 = vld [vmem:[#allocation9 + $0x178] sm:$0xff]
        %v1768 = vld [vmem:[#allocation9 + $0x180] sm:$0xff]
        %v1769 = vld [vmem:[#allocation9 + $0x188] sm:$0xff]
        %v1770 = vld [vmem:[#allocation9 + $0x190] sm:$0xff]
        %v1771 = vld [vmem:[#allocation9 + $0x198] sm:$0xff]
        %v1772 = vld [vmem:[#allocation9 + $0x1a0] sm:$0xff]
        %v1773 = vld [vmem:[#allocation9 + $0x1a8] sm:$0xff]
        %v1774 = vld [vmem:[#allocation9 + $0x1b0] sm:$0xff]
        %v1775 = vld [vmem:[#allocation9 + $0x1b8] sm:$0xff]
        %v1776 = vld [vmem:[#allocation9 + $0x1c0] sm:$0xff]
        %v1777 = vld [vmem:[#allocation9 + $0x1c8] sm:$0xff]
        %v1778 = vld [vmem:[#allocation9 + $0x1d0] sm:$0xff]
        %v1779 = vld [vmem:[#allocation9 + $0x1d8] sm:$0xff]
        %v1780 = vld [vmem:[#allocation9 + $0x1e0] sm:$0xff]
        %v1781 = vld [vmem:[#allocation9 + $0x1e8] sm:$0xff]
        %v1782 = vld [vmem:[#allocation9 + $0x1f0] sm:$0xff]
        %v1783 = vld [vmem:[#allocation9 + $0x1f8] sm:$0xff]
        %v1784 = vld [vmem:[#allocation9 + $0x200] sm:$0xff]
        %v1785 = vld [vmem:[#allocation9 + $0x208] sm:$0xff]
        %v1786 = vld [vmem:[#allocation9 + $0x210] sm:$0xff]
        %v1787 = vld [vmem:[#allocation9 + $0x218] sm:$0xff]
        %v1788 = vld [vmem:[#allocation9 + $0x220] sm:$0xff]
        %v1789 = vld [vmem:[#allocation9 + $0x228] sm:$0xff]
        %v1790 = vld [vmem:[#allocation9 + $0x230] sm:$0xff]
        %v1791 = vld [vmem:[#allocation9 + $0x238] sm:$0xff]
        %v1792 = vld [vmem:[#allocation9 + $0x240] sm:$0xff]
        %v1793 = vld [vmem:[#allocation9 + $0x248] sm:$0xff]
        %v1794 = vld [vmem:[#allocation9 + $0x250] sm:$0xff]
        %v1795 = vld [vmem:[#allocation9 + $0x258] sm:$0xff]
        %v1796 = vld [vmem:[#allocation9 + $0x260] sm:$0xff]
        %v1797 = vld [vmem:[#allocation9 + $0x268] sm:$0xff]
        %v1798 = vld [vmem:[#allocation9 + $0x270] sm:$0xff]
        %v1799 = vld [vmem:[#allocation9 + $0x278] sm:$0xff]
        %v1800 = vld [vmem:[#allocation9 + $0x280] sm:$0xff]
        %v1801 = vld [vmem:[#allocation9 + $0x288] sm:$0xff]
        %v1802 = vld [vmem:[#allocation9 + $0x290] sm:$0xff]
        %v1803 = vld [vmem:[#allocation9 + $0x298] sm:$0xff]
        %v1804 = vld [vmem:[#allocation9 + $0x2a0] sm:$0xff]
        %v1805 = vld [vmem:[#allocation9 + $0x2a8] sm:$0xff]
        %v1806 = vld [vmem:[#allocation9 + $0x2b0] sm:$0xff]
        %v1807 = vld [vmem:[#allocation9 + $0x2b8] sm:$0xff]
        %v1808 = vld [vmem:[#allocation9 + $0x2c0] sm:$0xff]
        %v1809 = vld [vmem:[#allocation9 + $0x2c8] sm:$0xff]
        %v1810 = vld [vmem:[#allocation9 + $0x2d0] sm:$0xff]
        %v1811 = vld [vmem:[#allocation9 + $0x2d8] sm:$0xff]
        %v1812 = vld [vmem:[#allocation9 + $0x2e0] sm:$0xff]
        %v1813 = vld [vmem:[#allocation9 + $0x2e8] sm:$0xff]
        %v1814 = vld [vmem:[#allocation9 + $0x2f0] sm:$0xff]
        %v1815 = vld [vmem:[#allocation9 + $0x2f8] sm:$0xff]
        %v1816 = vld [vmem:[#allocation9 + $0x300] sm:$0xff]
        %v1817 = vld [vmem:[#allocation9 + $0x308] sm:$0xff]
        %v1818 = vld [vmem:[#allocation9 + $0x310] sm:$0xff]
        %v1819 = vld [vmem:[#allocation9 + $0x318] sm:$0xff]
        %v1820 = vld [vmem:[#allocation9 + $0x320] sm:$0xff]
        %v1821 = vld [vmem:[#allocation9 + $0x328] sm:$0xff]
        %v1822 = vld [vmem:[#allocation9 + $0x330] sm:$0xff]
        %v1823 = vld [vmem:[#allocation9 + $0x338] sm:$0xff]
        %v1824 = vld [vmem:[#allocation9 + $0x340] sm:$0xff]
        %v1825 = vld [vmem:[#allocation9 + $0x348] sm:$0xff]
        %v1826 = vld [vmem:[#allocation9 + $0x350] sm:$0xff]
        %v1827 = vld [vmem:[#allocation9 + $0x358] sm:$0xff]
        %v1828 = vld [vmem:[#allocation9 + $0x360] sm:$0xff]
        %v1829 = vld [vmem:[#allocation9 + $0x368] sm:$0xff]
        %v1830 = vld [vmem:[#allocation9 + $0x370] sm:$0xff]
        %v1831 = vld [vmem:[#allocation9 + $0x378] sm:$0xff]
        %v1832 = vld [vmem:[#allocation9 + $0x380] sm:$0xff]
        %v1833 = vld [vmem:[#allocation9 + $0x388] sm:$0xff]
        %v1834 = vld [vmem:[#allocation9 + $0x390] sm:$0xff]
        %v1835 = vld [vmem:[#allocation9 + $0x398] sm:$0xff]
        %v1836 = vld [vmem:[#allocation9 + $0x3a0] sm:$0xff]
        %v1837 = vld [vmem:[#allocation9 + $0x3a8] sm:$0xff]
        %v1838 = vld [vmem:[#allocation9 + $0x3b0] sm:$0xff]
        %v1839 = vld [vmem:[#allocation9 + $0x3b8] sm:$0xff]
        %v1840 = vld [vmem:[#allocation9 + $0x3c0] sm:$0xff]
        %v1841 = vld [vmem:[#allocation9 + $0x3c8] sm:$0xff]
        %v1842 = vld [vmem:[#allocation9 + $0x3d0] sm:$0xff]
        %v1843 = vld [vmem:[#allocation9 + $0x3d8] sm:$0xff]
        %v1844 = vld [vmem:[#allocation9 + $0x3e0] sm:$0xff]
        %v1845 = vld [vmem:[#allocation9 + $0x3e8] sm:$0xff]
        %v1846 = vld [vmem:[#allocation9 + $0x3f0] sm:$0xff]
        %v1847 = vld [vmem:[#allocation9 + $0x3f8] sm:$0xff]
        %s1848 = sld [smem:[#allocation4]]
        %v1849 = vstv %s1848
        %1850 = vmatprep.subr.mxu0 0.0
        %1851 = vmatpush1.msra.mxu0 %v1720
        %1852 = vmatprep.subr.mxu0 0.0
        %1853 = vmatpush1.msra.mxu0 %v1721
        %1854 = vmatprep.subr.mxu0 0.0
        %1855 = vmatpush1.msra.mxu0 %v1722
        %1856 = vmatprep.subr.mxu0 0.0
        %1857 = vmatpush1.msra.mxu0 %v1723
        %1858 = vmatprep.subr.mxu0 0.0
        %1859 = vmatpush1.msra.mxu0 %v1724
        %1860 = vmatprep.subr.mxu0 0.0
        %1861 = vmatpush1.msra.mxu0 %v1725
        %1862 = vmatprep.subr.mxu0 0.0
        %1863 = vmatpush1.msra.mxu0 %v1726
        %1864 = vmatprep.subr.mxu0 0.0
        %1865 = vmatpush1.msra.mxu0 %v1727
        %1866 = vmatprep.subr.mxu0 0.0
        %1867 = vmatpush1.msra.mxu0 %v1728
        %1868 = vmatprep.subr.mxu0 0.0
        %1869 = vmatpush1.msra.mxu0 %v1729
        %1870 = vmatprep.subr.mxu0 0.0
        %1871 = vmatpush1.msra.mxu0 %v1730
        %1872 = vmatprep.subr.mxu0 0.0
        %1873 = vmatpush1.msra.mxu0 %v1731
        %1874 = vmatprep.subr.mxu0 0.0
        %1875 = vmatpush1.msra.mxu0 %v1732
        %1876 = vmatprep.subr.mxu0 0.0
        %1877 = vmatpush1.msra.mxu0 %v1733
        %1878 = vmatprep.subr.mxu0 0.0
        %1879 = vmatpush1.msra.mxu0 %v1734
        %1880 = vmatprep.subr.mxu0 0.0
        %1881 = vmatpush1.msra.mxu0 %v1735
        %1882 = vmatprep.subr.mxu0 0.0
        %1883 = vmatpush1.msra.mxu0 %v1736
        %1884 = vmatprep.subr.mxu0 0.0
        %1885 = vmatpush1.msra.mxu0 %v1737
        %1886 = vmatprep.subr.mxu0 0.0
        %1887 = vmatpush1.msra.mxu0 %v1738
        %1888 = vmatprep.subr.mxu0 0.0
        %1889 = vmatpush1.msra.mxu0 %v1739
        %1890 = vmatprep.subr.mxu0 0.0
        %1891 = vmatpush1.msra.mxu0 %v1740
        %1892 = vmatprep.subr.mxu0 0.0
        %1893 = vmatpush1.msra.mxu0 %v1741
        %1894 = vmatprep.subr.mxu0 0.0
        %1895 = vmatpush1.msra.mxu0 %v1742
        %1896 = vmatprep.subr.mxu0 0.0
        %1897 = vmatpush1.msra.mxu0 %v1743
        %1898 = vmatprep.subr.mxu0 0.0
        %1899 = vmatpush1.msra.mxu0 %v1744
        %1900 = vmatprep.subr.mxu0 0.0
        %1901 = vmatpush1.msra.mxu0 %v1745
        %1902 = vmatprep.subr.mxu0 0.0
        %1903 = vmatpush1.msra.mxu0 %v1746
        %1904 = vmatprep.subr.mxu0 0.0
        %1905 = vmatpush1.msra.mxu0 %v1747
        %1906 = vmatprep.subr.mxu0 0.0
        %1907 = vmatpush1.msra.mxu0 %v1748
        %1908 = vmatprep.subr.mxu0 0.0
        %1909 = vmatpush1.msra.mxu0 %v1749
        %1910 = vmatprep.subr.mxu0 0.0
        %1911 = vmatpush1.msra.mxu0 %v1750
        %1912 = vmatprep.subr.mxu0 0.0
        %1913 = vmatpush1.msra.mxu0 %v1751
        %1914 = vmatprep.mubr.f32.mxu0 %v1665
        %1915 = vmatmul.mubr.f32.gmra.mrb[0].mxu0 %v1664
        %v1916 = vpop.f32.mrb[0].mxu0
        %v1917 = vadd.f32 %v1849, %v1916
        %v1918 = vpop.f32.mrb[0].mxu0
        %1919 = vmatprep.mubr.f32.mxu0 %v1673
        %1920 = vmatmul.mubr.f32.gmra.mrb[0].mxu0 %v1672
        %v1921 = vpop.f32.mrb[0].mxu0
        %v1922 = vadd.f32 %v1849, %v1921
        %v1923 = vpop.f32.mrb[0].mxu0
        %1924 = vmatprep.mubr.f32.mxu0 %v1681
        %1925 = vmatmul.mubr.f32.gmra.mrb[0].mxu0 %v1680
        %v1926 = vpop.f32.mrb[0].mxu0
        %v1927 = vadd.f32 %v1849, %v1926
        %v1928 = vpop.f32.mrb[0].mxu0
        %1929 = vmatprep.mubr.f32.mxu0 %v1689
        %1930 = vmatmul.mubr.f32.gmra.mrb[0].mxu0 %v1688
        %v1931 = vpop.f32.mrb[0].mxu0
        %v1932 = vadd.f32 %v1849, %v1931
        %v1933 = vpop.f32.mrb[0].mxu0
        %1934 = vmatprep.mubr.f32.mxu0 %v1697
        %1935 = vmatmul.mubr.f32.gmra.mrb[0].mxu0 %v1696
        %v1936 = vpop.f32.mrb[0].mxu0
        %v1937 = vadd.f32 %v1849, %v1936
        %v1938 = vpop.f32.mrb[0].mxu0
        %1939 = vmatprep.mubr.f32.mxu0 %v1705
        %1940 = vmatmul.mubr.f32.gmra.mrb[0].mxu0 %v1704
        %v1941 = vpop.f32.mrb[0].mxu0
        %v1942 = vadd.f32 %v1849, %v1941
        %v1943 = vpop.f32.mrb[0].mxu0
        %1944 = vmatprep.mubr.f32.mxu0 %v1713
        %1945 = vmatmul.mubr.f32.gmra.mrb[0].mxu0 %v1712
        %v1946 = vpop.f32.mrb[0].mxu0
        %v1947 = vadd.f32 %v1849, %v1946
        %v1948 = vpop.f32.mrb[0].mxu0
        %1949 = vdwg.mxu0
        %1950 = vmatprep.subr.mxu0 0.0
        %1951 = vmatpush1.msra.mxu0 %v1752
        %1952 = vmatprep.subr.mxu0 0.0
        %1953 = vmatpush1.msra.mxu0 %v1753
        %1954 = vmatprep.subr.mxu0 0.0
        %1955 = vmatpush1.msra.mxu0 %v1754
        %1956 = vmatprep.subr.mxu0 0.0
        %1957 = vmatpush1.msra.mxu0 %v1755
        %1958 = vmatprep.subr.mxu0 0.0
        %1959 = vmatpush1.msra.mxu0 %v1756
        %1960 = vmatprep.subr.mxu0 0.0
        %1961 = vmatpush1.msra.mxu0 %v1757
        %1962 = vmatprep.subr.mxu0 0.0
        %1963 = vmatpush1.msra.mxu0 %v1758
        %1964 = vmatprep.subr.mxu0 0.0
        %1965 = vmatpush1.msra.mxu0 %v1759
        %1966 = vmatprep.subr.mxu0 0.0
        %1967 = vmatpush1.msra.mxu0 %v1760
        %1968 = vmatprep.subr.mxu0 0.0
        %1969 = vmatpush1.msra.mxu0 %v1761
        %1970 = vmatprep.subr.mxu0 0.0
        %1971 = vmatpush1.msra.mxu0 %v1762
        %1972 = vmatprep.subr.mxu0 0.0
        %1973 = vmatpush1.msra.mxu0 %v1763
        %1974 = vmatprep.subr.mxu0 0.0
        %1975 = vmatpush1.msra.mxu0 %v1764
        %1976 = vmatprep.subr.mxu0 0.0
        %1977 = vmatpush1.msra.mxu0 %v1765
        %1978 = vmatprep.subr.mxu0 0.0
        %1979 = vmatpush1.msra.mxu0 %v1766
        %1980 = vmatprep.subr.mxu0 0.0
        %1981 = vmatpush1.msra.mxu0 %v1767
        %1982 = vmatprep.subr.mxu0 0.0
        %1983 = vmatpush1.msra.mxu0 %v1768
        %1984 = vmatprep.subr.mxu0 0.0
        %1985 = vmatpush1.msra.mxu0 %v1769
        %1986 = vmatprep.subr.mxu0 0.0
        %1987 = vmatpush1.msra.mxu0 %v1770
        %1988 = vmatprep.subr.mxu0 0.0
        %1989 = vmatpush1.msra.mxu0 %v1771
        %1990 = vmatprep.subr.mxu0 0.0
        %1991 = vmatpush1.msra.mxu0 %v1772
        %1992 = vmatprep.subr.mxu0 0.0
        %1993 = vmatpush1.msra.mxu0 %v1773
        %1994 = vmatprep.subr.mxu0 0.0
        %1995 = vmatpush1.msra.mxu0 %v1774
        %1996 = vmatprep.subr.mxu0 0.0
        %1997 = vmatpush1.msra.mxu0 %v1775
        %1998 = vmatprep.subr.mxu0 0.0
        %1999 = vmatpush1.msra.mxu0 %v1776
        %2000 = vmatprep.subr.mxu0 0.0
        %2001 = vmatpush1.msra.mxu0 %v1777
        %2002 = vmatprep.subr.mxu0 0.0
        %2003 = vmatpush1.msra.mxu0 %v1778
        %2004 = vmatprep.subr.mxu0 0.0
        %2005 = vmatpush1.msra.mxu0 %v1779
        %2006 = vmatprep.subr.mxu0 0.0
        %2007 = vmatpush1.msra.mxu0 %v1780
        %2008 = vmatprep.subr.mxu0 0.0
        %2009 = vmatpush1.msra.mxu0 %v1781
        %2010 = vmatprep.subr.mxu0 0.0
        %2011 = vmatpush1.msra.mxu0 %v1782
        %2012 = vmatprep.subr.mxu0 0.0
        %2013 = vmatpush1.msra.mxu0 %v1783
        %2014 = vmatprep.mubr.f32.mxu0 %v1667
        %2015 = vmatmul.mubr.f32.gmra.mrb[0].mxu0 %v1666
        %v2016 = vpop.f32.mrb[0].mxu0
        %v2017 = vadd.f32 %v1917, %v2016
        %v2018 = vpop.f32.mrb[0].mxu0
        %2019 = vmatprep.mubr.f32.mxu0 %v1675
        %2020 = vmatmul.mubr.f32.gmra.mrb[0].mxu0 %v1674
        %v2021 = vpop.f32.mrb[0].mxu0
        %v2022 = vadd.f32 %v1922, %v2021
        %v2023 = vpop.f32.mrb[0].mxu0
        %2024 = vmatprep.mubr.f32.mxu0 %v1683
        %2025 = vmatmul.mubr.f32.gmra.mrb[0].mxu0 %v1682
        %v2026 = vpop.f32.mrb[0].mxu0
        %v2027 = vadd.f32 %v1927, %v2026
        %v2028 = vpop.f32.mrb[0].mxu0
        %2029 = vmatprep.mubr.f32.mxu0 %v1691
        %2030 = vmatmul.mubr.f32.gmra.mrb[0].mxu0 %v1690
        %v2031 = vpop.f32.mrb[0].mxu0
        %v2032 = vadd.f32 %v1932, %v2031
        %v2033 = vpop.f32.mrb[0].mxu0
        %2034 = vmatprep.mubr.f32.mxu0 %v1699
        %2035 = vmatmul.mubr.f32.gmra.mrb[0].mxu0 %v1698
        %v2036 = vpop.f32.mrb[0].mxu0
        %v2037 = vadd.f32 %v1937, %v2036
        %v2038 = vpop.f32.mrb[0].mxu0
        %2039 = vmatprep.mubr.f32.mxu0 %v1707
        %2040 = vmatmul.mubr.f32.gmra.mrb[0].mxu0 %v1706
        %v2041 = vpop.f32.mrb[0].mxu0
        %v2042 = vadd.f32 %v1942, %v2041
        %v2043 = vpop.f32.mrb[0].mxu0
        %2044 = vmatprep.mubr.f32.mxu0 %v1715
        %2045 = vmatmul.mubr.f32.gmra.mrb[0].mxu0 %v1714
        %v2046 = vpop.f32.mrb[0].mxu0
        %v2047 = vadd.f32 %v1947, %v2046
        %v2048 = vpop.f32.mrb[0].mxu0
        %2049 = vdwg.mxu0
        %2050 = vmatprep.subr.mxu0 0.0
        %2051 = vmatpush1.msra.mxu0 %v1784
        %2052 = vmatprep.subr.mxu0 0.0
        %2053 = vmatpush1.msra.mxu0 %v1785
        %2054 = vmatprep.subr.mxu0 0.0
        %2055 = vmatpush1.msra.mxu0 %v1786
        %2056 = vmatprep.subr.mxu0 0.0
        %2057 = vmatpush1.msra.mxu0 %v1787
        %2058 = vmatprep.subr.mxu0 0.0
        %2059 = vmatpush1.msra.mxu0 %v1788
        %2060 = vmatprep.subr.mxu0 0.0
        %2061 = vmatpush1.msra.mxu0 %v1789
        %2062 = vmatprep.subr.mxu0 0.0
        %2063 = vmatpush1.msra.mxu0 %v1790
        %2064 = vmatprep.subr.mxu0 0.0
        %2065 = vmatpush1.msra.mxu0 %v1791
        %2066 = vmatprep.subr.mxu0 0.0
        %2067 = vmatpush1.msra.mxu0 %v1792
        %2068 = vmatprep.subr.mxu0 0.0
        %2069 = vmatpush1.msra.mxu0 %v1793
        %2070 = vmatprep.subr.mxu0 0.0
        %2071 = vmatpush1.msra.mxu0 %v1794
        %2072 = vmatprep.subr.mxu0 0.0
        %2073 = vmatpush1.msra.mxu0 %v1795
        %2074 = vmatprep.subr.mxu0 0.0
        %2075 = vmatpush1.msra.mxu0 %v1796
        %2076 = vmatprep.subr.mxu0 0.0
        %2077 = vmatpush1.msra.mxu0 %v1797
        %2078 = vmatprep.subr.mxu0 0.0
        %2079 = vmatpush1.msra.mxu0 %v1798
        %2080 = vmatprep.subr.mxu0 0.0
        %2081 = vmatpush1.msra.mxu0 %v1799
        %2082 = vmatprep.subr.mxu0 0.0
        %2083 = vmatpush1.msra.mxu0 %v1800
        %2084 = vmatprep.subr.mxu0 0.0
        %2085 = vmatpush1.msra.mxu0 %v1801
        %2086 = vmatprep.subr.mxu0 0.0
        %2087 = vmatpush1.msra.mxu0 %v1802
        %2088 = vmatprep.subr.mxu0 0.0
        %2089 = vmatpush1.msra.mxu0 %v1803
        %2090 = vmatprep.subr.mxu0 0.0
        %2091 = vmatpush1.msra.mxu0 %v1804
        %2092 = vmatprep.subr.mxu0 0.0
        %2093 = vmatpush1.msra.mxu0 %v1805
        %2094 = vmatprep.subr.mxu0 0.0
        %2095 = vmatpush1.msra.mxu0 %v1806
        %2096 = vmatprep.subr.mxu0 0.0
        %2097 = vmatpush1.msra.mxu0 %v1807
        %2098 = vmatprep.subr.mxu0 0.0
        %2099 = vmatpush1.msra.mxu0 %v1808
        %2100 = vmatprep.subr.mxu0 0.0
        %2101 = vmatpush1.msra.mxu0 %v1809
        %2102 = vmatprep.subr.mxu0 0.0
        %2103 = vmatpush1.msra.mxu0 %v1810
        %2104 = vmatprep.subr.mxu0 0.0
        %2105 = vmatpush1.msra.mxu0 %v1811
        %2106 = vmatprep.subr.mxu0 0.0
        %2107 = vmatpush1.msra.mxu0 %v1812
        %2108 = vmatprep.subr.mxu0 0.0
        %2109 = vmatpush1.msra.mxu0 %v1813
        %2110 = vmatprep.subr.mxu0 0.0
        %2111 = vmatpush1.msra.mxu0 %v1814
        %2112 = vmatprep.subr.mxu0 0.0
        %2113 = vmatpush1.msra.mxu0 %v1815
        %2114 = vmatprep.mubr.f32.mxu0 %v1669
        %2115 = vmatmul.mubr.f32.gmra.mrb[0].mxu0 %v1668
        %v2116 = vpop.f32.mrb[0].mxu0
        %v2117 = vadd.f32 %v2017, %v2116
        %v2118 = vpop.f32.mrb[0].mxu0
        %2119 = vmatprep.mubr.f32.mxu0 %v1677
        %2120 = vmatmul.mubr.f32.gmra.mrb[0].mxu0 %v1676
        %v2121 = vpop.f32.mrb[0].mxu0
        %v2122 = vadd.f32 %v2022, %v2121
        %v2123 = vpop.f32.mrb[0].mxu0
        %2124 = vmatprep.mubr.f32.mxu0 %v1685
        %2125 = vmatmul.mubr.f32.gmra.mrb[0].mxu0 %v1684
        %v2126 = vpop.f32.mrb[0].mxu0
        %v2127 = vadd.f32 %v2027, %v2126
        %v2128 = vpop.f32.mrb[0].mxu0
        %2129 = vmatprep.mubr.f32.mxu0 %v1693
        %2130 = vmatmul.mubr.f32.gmra.mrb[0].mxu0 %v1692
        %v2131 = vpop.f32.mrb[0].mxu0
        %v2132 = vadd.f32 %v2032, %v2131
        %v2133 = vpop.f32.mrb[0].mxu0
        %2134 = vmatprep.mubr.f32.mxu0 %v1701
        %2135 = vmatmul.mubr.f32.gmra.mrb[0].mxu0 %v1700
        %v2136 = vpop.f32.mrb[0].mxu0
        %v2137 = vadd.f32 %v2037, %v2136
        %v2138 = vpop.f32.mrb[0].mxu0
        %2139 = vmatprep.mubr.f32.mxu0 %v1709
        %2140 = vmatmul.mubr.f32.gmra.mrb[0].mxu0 %v1708
        %v2141 = vpop.f32.mrb[0].mxu0
        %v2142 = vadd.f32 %v2042, %v2141
        %v2143 = vpop.f32.mrb[0].mxu0
        %2144 = vmatprep.mubr.f32.mxu0 %v1717
        %2145 = vmatmul.mubr.f32.gmra.mrb[0].mxu0 %v1716
        %v2146 = vpop.f32.mrb[0].mxu0
        %v2147 = vadd.f32 %v2047, %v2146
        %v2148 = vpop.f32.mrb[0].mxu0
        %2149 = vdwg.mxu0
        %2150 = vmatprep.subr.mxu0 0.0
        %2151 = vmatpush1.msra.mxu0 %v1816
        %2152 = vmatprep.subr.mxu0 0.0
        %2153 = vmatpush1.msra.mxu0 %v1817
        %2154 = vmatprep.subr.mxu0 0.0
        %2155 = vmatpush1.msra.mxu0 %v1818
        %2156 = vmatprep.subr.mxu0 0.0
        %2157 = vmatpush1.msra.mxu0 %v1819
        %2158 = vmatprep.subr.mxu0 0.0
        %2159 = vmatpush1.msra.mxu0 %v1820
        %2160 = vmatprep.subr.mxu0 0.0
        %2161 = vmatpush1.msra.mxu0 %v1821
        %2162 = vmatprep.subr.mxu0 0.0
        %2163 = vmatpush1.msra.mxu0 %v1822
        %2164 = vmatprep.subr.mxu0 0.0
        %2165 = vmatpush1.msra.mxu0 %v1823
        %2166 = vmatprep.subr.mxu0 0.0
        %2167 = vmatpush1.msra.mxu0 %v1824
        %2168 = vmatprep.subr.mxu0 0.0
        %2169 = vmatpush1.msra.mxu0 %v1825
        %2170 = vmatprep.subr.mxu0 0.0
        %2171 = vmatpush1.msra.mxu0 %v1826
        %2172 = vmatprep.subr.mxu0 0.0
        %2173 = vmatpush1.msra.mxu0 %v1827
        %2174 = vmatprep.subr.mxu0 0.0
        %2175 = vmatpush1.msra.mxu0 %v1828
        %2176 = vmatprep.subr.mxu0 0.0
        %2177 = vmatpush1.msra.mxu0 %v1829
        %2178 = vmatprep.subr.mxu0 0.0
        %2179 = vmatpush1.msra.mxu0 %v1830
        %2180 = vmatprep.subr.mxu0 0.0
        %2181 = vmatpush1.msra.mxu0 %v1831
        %2182 = vmatprep.subr.mxu0 0.0
        %2183 = vmatpush1.msra.mxu0 %v1832
        %2184 = vmatprep.subr.mxu0 0.0
        %2185 = vmatpush1.msra.mxu0 %v1833
        %2186 = vmatprep.subr.mxu0 0.0
        %2187 = vmatpush1.msra.mxu0 %v1834
        %2188 = vmatprep.subr.mxu0 0.0
        %2189 = vmatpush1.msra.mxu0 %v1835
        %2190 = vmatprep.subr.mxu0 0.0
        %2191 = vmatpush1.msra.mxu0 %v1836
        %2192 = vmatprep.subr.mxu0 0.0
        %2193 = vmatpush1.msra.mxu0 %v1837
        %2194 = vmatprep.subr.mxu0 0.0
        %2195 = vmatpush1.msra.mxu0 %v1838
        %2196 = vmatprep.subr.mxu0 0.0
        %2197 = vmatpush1.msra.mxu0 %v1839
        %2198 = vmatprep.subr.mxu0 0.0
        %2199 = vmatpush1.msra.mxu0 %v1840
        %2200 = vmatprep.subr.mxu0 0.0
        %2201 = vmatpush1.msra.mxu0 %v1841
        %2202 = vmatprep.subr.mxu0 0.0
        %2203 = vmatpush1.msra.mxu0 %v1842
        %2204 = vmatprep.subr.mxu0 0.0
        %2205 = vmatpush1.msra.mxu0 %v1843
        %2206 = vmatprep.subr.mxu0 0.0
        %2207 = vmatpush1.msra.mxu0 %v1844
        %2208 = vmatprep.subr.mxu0 0.0
        %2209 = vmatpush1.msra.mxu0 %v1845
        %2210 = vmatprep.subr.mxu0 0.0
        %2211 = vmatpush1.msra.mxu0 %v1846
        %2212 = vmatprep.subr.mxu0 0.0
        %2213 = vmatpush1.msra.mxu0 %v1847
        %2214 = vmatprep.mubr.f32.mxu0 %v1671
        %2215 = vmatmul.mubr.f32.gmra.mrb[0].mxu0 %v1670
        %v2216 = vpop.f32.mrb[0].mxu0
        %v2217 = vadd.f32 %v2117, %v2216
        %v2218 = vpop.f32.mrb[0].mxu0
        %2219 = vmatprep.mubr.f32.mxu0 %v1679
        %2220 = vmatmul.mubr.f32.gmra.mrb[0].mxu0 %v1678
        %v2221 = vpop.f32.mrb[0].mxu0
        %v2222 = vadd.f32 %v2122, %v2221
        %v2223 = vpop.f32.mrb[0].mxu0
        %2224 = vmatprep.mubr.f32.mxu0 %v1687
        %2225 = vmatmul.mubr.f32.gmra.mrb[0].mxu0 %v1686
        %v2226 = vpop.f32.mrb[0].mxu0
        %v2227 = vadd.f32 %v2127, %v2226
        %v2228 = vpop.f32.mrb[0].mxu0
        %2229 = vmatprep.mubr.f32.mxu0 %v1695
        %2230 = vmatmul.mubr.f32.gmra.mrb[0].mxu0 %v1694
        %v2231 = vpop.f32.mrb[0].mxu0
        %v2232 = vadd.f32 %v2132, %v2231
        %v2233 = vpop.f32.mrb[0].mxu0
        %2234 = vmatprep.mubr.f32.mxu0 %v1703
        %2235 = vmatmul.mubr.f32.gmra.mrb[0].mxu0 %v1702
        %v2236 = vpop.f32.mrb[0].mxu0
        %v2237 = vadd.f32 %v2137, %v2236
        %v2238 = vpop.f32.mrb[0].mxu0
        %2239 = vmatprep.mubr.f32.mxu0 %v1711
        %2240 = vmatmul.mubr.f32.gmra.mrb[0].mxu0 %v1710
        %v2241 = vpop.f32.mrb[0].mxu0
        %v2242 = vadd.f32 %v2142, %v2241
        %v2243 = vpop.f32.mrb[0].mxu0
        %2244 = vmatprep.mubr.f32.mxu0 %v1719
        %2245 = vmatmul.mubr.f32.gmra.mrb[0].mxu0 %v1718
        %v2246 = vpop.f32.mrb[0].mxu0
        %v2247 = vadd.f32 %v2147, %v2246
        %v2248 = vpop.f32.mrb[0].mxu0
        %2249 = vdwg.mxu0
        %v2250 = vsub.f32 0.0, %v2217
        %v2251 = vsub.f32 0.0, %v2222
        %v2252 = vsub.f32 0.0, %v2227
        %v2253 = vsub.f32 0.0, %v2232
        %v2254 = vsub.f32 0.0, %v2237
        %v2255 = vsub.f32 0.0, %v2242
        %v2256 = vsub.f32 0.0, %v2247
        %v2257 = vmul.f32 %v2250, 1.442695
        %v2258 = vpow.pop %v2257
        %v2259 = vmul.f32 %v2251, 1.442695
        %v2260 = vpow.pop %v2259
        %v2261 = vmul.f32 %v2252, 1.442695
        %v2262 = vpow.pop %v2261
        %v2263 = vmul.f32 %v2253, 1.442695
        %v2264 = vpow.pop %v2263
        %v2265 = vmul.f32 %v2254, 1.442695
        %v2266 = vpow.pop %v2265
        %v2267 = vmul.f32 %v2255, 1.442695
        %v2268 = vpow.pop %v2267
        %v2269 = vmul.f32 %v2256, 1.442695
        %v2270 = vpow.pop %v2269
        %v2271 = vadd.f32 %v2258, 1.0
        %v2272 = vadd.f32 %v2260, 1.0
        %v2273 = vadd.f32 %v2262, 1.0
        %v2274 = vadd.f32 %v2264, 1.0
        %v2275 = vadd.f32 %v2266, 1.0
        %v2276 = vadd.f32 %v2268, 1.0
        %v2277 = vadd.f32 %v2270, 1.0
        %v2278 = vrcp.pop %v2271
        %v2279 = vrcp.pop %v2272
        %v2280 = vrcp.pop %v2273
        %v2281 = vrcp.pop %v2274
        %v2282 = vrcp.pop %v2275
        %v2283 = vrcp.pop %v2276
        %v2284 = vrcp.pop %v2277
        %2285 = vst [vmem:[%s323] sm:$0xff] %v2278
        %2286 = vst [vmem:[%s323 + $0x8] sm:$0xff] %v2279
        %2287 = vst [vmem:[%s323 + $0x10] sm:$0xff] %v2280
        %2288 = vst [vmem:[%s323 + $0x18] sm:$0xff] %v2281
        %2289 = vst [vmem:[%s323 + $0x20] sm:$0xff] %v2282
        %2290 = vst [vmem:[%s323 + $0x28] sm:$0xff] %v2283
        %2291 = vst [vmem:[%s323 + $0x30] sm:$0xff] %v2284
        %p2292 = scmp.lt.s32.totalorder %s21, 1
        %s2293 = scalar_select %p2292, %s21, 1
        %s2294 = smul.addr %s2293, 7
        %s2295 = smul.addr %s2294, 8
        %s2296 = scalar_lea.vmem %s7, %s2295
        // Predicated region
        $region61: #{decoder_forward.1} parent=47 // pred_check
          %p2297 = pneg %p191
        $region62: #{decoder_forward.1} parent=47 // pred_check_branch
          %2299 = sbr.rel (%p2297) target = $region64
        $region63: #{decoder_forward.1} parent=47 // pred_region
          _
        $region64: #{decoder_forward.1} parent=47 // pred_fallthru
          _
      $region48: #{decoder_forward.1} parent=5 // pred_fallthru
        _
      %p2300 = scmp.le.s32.totalorder 2, %s16
      // Predicated region
      $region65: #{decoder_forward.1} parent=5 // pred_check
        %p2301 = pneg %p2300
      $region66: #{decoder_forward.1} parent=5 // pred_check_branch
        %2303 = sbr.rel (%p2301) target = $region68
      $region67: #{decoder_forward.1} parent=5 // pred_region
        %s2304 = ssub.s32 %s16, 2
        // Predicated region
        $region69: #{decoder_forward.1} parent=67 // pred_check
          %p2305 = pneg %p197
        $region70: #{decoder_forward.1} parent=67 // pred_check_branch
          %2307 = sbr.rel (%p2305) target = $region72
        $region71: #{decoder_forward.1} parent=67 // pred_region
          %p2308 = scmp.lt.s32.totalorder %s22, 1
          %s2309 = scalar_select %p2308, %s22, 1
          %s2310 = smul.addr %s2309, 7
          %s2311 = smul.addr %s2310, 8
          %s2312 = scalar_lea.vmem %s7, %s2311
        $region72: #{decoder_forward.1} parent=67 // pred_fallthru
          _
      $region68: #{decoder_forward.1} parent=5 // pred_fallthru
        _
    $region6: #{decoder_forward.1} parent=1 // loop_footer
      %s20 = sadd.s32 1, %s16
    $region7: #{decoder_forward.1} parent=1 // loop_footer_branch
      %15 = sbr.rel target = $region3
    $region8: #{decoder_forward.1} parent=1 // loop_exit
      _
    %2313 = vsyncpa [#allocation6], 1
    %s2314 = scalar_lea.sflag [#allocation6], 1
    %2315 = vsyncpa %s2314, 1
    %2316 = vsyncpa [#allocation8], 1

</llo_original>
